<compile_context>
chip_gen: v7x
topology: tpu7x:2x2x1
jax: 0.10.0
libtpu: 0.0.40
codegen_flags: <defaults>
</compile_context>

<pallas_src>
import jax
import jax.numpy as jnp
from jax.experimental import pallas as pl
from jax.experimental.pallas import tpu as pltpu

NUM_CLASSES = 10
FEATURE_DIM = 32            # base_model.classifier[1].in_features (stand-in)
OUTPUT_DIMS = [64, 32]      # hidden layer sizes of the replaced classifier
DROPOUT = 0.2               # inactive at inference (eval mode)

BT = 8                      # batch tile (sublane-dense output rows)
LANES = 128


def _round_up(x, m):
    return (x + m - 1) // m * m


def _row_tile(total):
    """Largest multiple-of-8 divisor of `total` that is <= min(512, total//2)."""
    cap = min(512, total // 2 if total >= 16 else total)
    t = cap - cap % 8
    while t >= 8:
        if total % t == 0:
            return t
        t -= 8
    return total


def make_forward_kernel(n_head_layers):
    def kernel(x_ref, pt_ref, wc_ref, bc_ref, *rest):
        head = rest[:-2]
        out_ref = rest[-2]
        acc_ref = rest[-1]
        rt = pl.program_id(1)

        @pl.when(rt == 0)
        def _init():
            acc_ref[...] = jnp.zeros_like(acc_ref)

        # ---- backbone tile: folded 1x1 conv (MXU, K = S*C >= 128, bf16 ops) ----
        h = jnp.dot(x_ref[...], wc_ref[...], preferred_element_type=jnp.float32)
        h = jnp.maximum(h + bc_ref[...], 0.0)          # f32 elementwise (v5e-safe)

        # ---- mean-pool partial sums on the MXU (keeps reduction off the XLU) ----
        # acc[b, :] += sum_r PT[r, b] * h[r, :]
        acc_ref[...] += jax.lax.dot_general(
            pt_ref[...], h, (((0,), (0,)), ((), ())),
            preferred_element_type=jnp.float32)

        # ---- classifier head + softmax: exactly once, at the last reduction step ----
        @pl.when(rt == pl.num_programs(1) - 1)
        def _finalize():
            # first head weight is pre-fused with the fold-collapse matrix:
            # [BT, S*F] @ [S*F, D1]
            z = acc_ref[...]
            for i in range(n_head_layers):
                w = head[2 * i][...]
                b = head[2 * i + 1][...]
                z = jnp.dot(z, w, preferred_element_type=jnp.float32) + b
                if i < n_head_layers - 1:
                    z = jnp.maximum(z, 0.0)   # ReLU; Dropout == identity (eval)
            # softmax on the 128-wide padded class slab (pad bias = -1e30 -> exp 0)
            m = jnp.max(z, axis=-1, keepdims=True)
            e = jnp.exp(z - m)
            inv = pl.reciprocal(jnp.sum(e, axis=-1, keepdims=True), approx=True)
            out_ref[...] = (e * inv).astype(out_ref.dtype)

    return kernel


def network_forward(x_nchw, params):
    """params = [wc, bc, w1, b1, w2, b2, ..., w_out, b_out]."""
    wc, bc = params[0], params[1]
    head = list(params[2:])
    n_head_layers = len(head) // 2

    B, C, H, W = x_nchw.shape
    HW = H * W
    F = wc.shape[1]

    # ---- wrapper-side layout glue (plumbing, not compute) ----
    # Fold S consecutive pixels into the channel axis so the contraction depth
    # (and input lane width) is >= 128.
    S = max(1, LANES // max(C, 1))
    while S > 1 and HW % S:
        S //= 2
    K_fold = S * C
    R_b = HW // S                        # folded rows per image
    B_pad = _round_up(max(B, 1), BT)
    NB = B_pad // BT                     # batch tiles (parallel grid axis)
    RBT = BT * R_b                       # folded rows per batch tile
    tile_r = _row_tile(RBT)
    NT = RBT // tile_r                   # reduction steps (arbitrary grid axis)
    assert RBT % tile_r == 0 and tile_r % 8 == 0

    # input: NCHW -> channels-last folded rows [B_pad*R_b, S*C]; bf16 MXU operand
    xf = jnp.transpose(x_nchw, (0, 2, 3, 1)).reshape(B, R_b, K_fold)
    xf = jnp.pad(xf, ((0, B_pad - B), (0, 0), (0, 0)))
    xf = xf.reshape(B_pad * R_b, K_fold).astype(jnp.bfloat16)

    # folded 1x1-conv weight (block diagonal) + bias
    wc_fold = jnp.kron(jnp.eye(S, dtype=jnp.float32),
                       wc.astype(jnp.float32)).astype(jnp.bfloat16)   # [S*C, S*F]
    bc_fold = jnp.tile(bc.astype(jnp.float32), (1, S))                # [1,  S*F]

    # mean-pool matrix (transposed): PT[r, b] = 1/HW if folded row r is in batch b
    pool_t = (jnp.kron(jnp.eye(BT, dtype=jnp.float32),
                       jnp.ones((R_b, 1), jnp.float32)) / HW)         # [RBT, BT]

    # group-sum matrix collapsing the S folded copies of the feature axis;
    # pre-fused into the first head weight (saves a finalize matmul + operand).
    gsum = jnp.tile(jnp.eye(F, dtype=jnp.float32), (S, 1))            # [S*F, F]

    # classifier head (f32); pad the final layer to a lane-dense 128-wide slab
    out_pad = _round_up(NUM_CLASSES, LANES)
    head = [h.astype(jnp.float32) for h in head]
    head[0] = gsum @ head[0]                                          # [S*F, D1]
    head[-2] = jnp.pad(head[-2], ((0, 0), (0, out_pad - NUM_CLASSES)))
    head[-1] = jnp.pad(head[-1], ((0, 0), (0, out_pad - NUM_CLASSES)),
                       constant_values=-1e30)

    args = [xf, pool_t, wc_fold, bc_fold] + head

    def resident(a):                     # constant block index -> stays in VMEM
        nd = a.ndim
        return pl.BlockSpec(a.shape, lambda bt, rt, _nd=nd: (0,) * _nd)

    in_specs = [
        pl.BlockSpec((tile_r, K_fold), lambda bt, rt, _nt=NT: (bt * _nt + rt, 0)),
        pl.BlockSpec((tile_r, BT), lambda bt, rt: (rt, 0)),
        resident(wc_fold),
        resident(bc_fold),
    ] + [resident(h) for h in head]

    out_full = pl.pallas_call(
        make_forward_kernel(n_head_layers),
        grid=(NB, NT),
        in_specs=in_specs,
        out_specs=pl.BlockSpec((BT, out_pad), lambda bt, rt: (bt, 0)),
        out_shape=jax.ShapeDtypeStruct((B_pad, out_pad), jnp.float32),
        scratch_shapes=[pltpu.VMEM((BT, S * F), jnp.float32)],
        compiler_params=pltpu.CompilerParams(
            dimension_semantics=("parallel", "arbitrary"),
            vmem_limit_bytes=32 * 1024 * 1024),
    )(*args)

    return out_full[:B, :NUM_CLASSES]


def reference_forward(x_nchw, params):
    """Pure-JAX reference of the same forward (f32 everywhere)."""
    wc, bc = params[0], params[1]
    head = params[2:]
    B, C, H, W = x_nchw.shape
    xf = jnp.transpose(x_nchw, (0, 2, 3, 1)).reshape(B, H * W, C)
    h = jnp.maximum(xf @ wc + bc, 0.0)
    z = jnp.mean(h, axis=1)
    n = len(head) // 2
    for i in range(n):
        z = z @ head[2 * i] + head[2 * i + 1]
        if i < n - 1:
            z = jnp.maximum(z, 0.0)
    return jax.nn.softmax(z, axis=-1)


def init_params(key, in_channels):
    """Deterministic PyTorch-style uniform(-1/sqrt(fan_in), 1/sqrt(fan_in)) init."""
    params = []

    def linear(key, fan_in, fan_out):
        k_w, k_b = jax.random.split(key)
        bound = 1.0 / jnp.sqrt(jnp.float32(fan_in))
        w = jax.random.uniform(k_w, (fan_in, fan_out), jnp.float32, -bound, bound)
        b = jax.random.uniform(k_b, (1, fan_out), jnp.float32, -bound, bound)
        return w, b

    keys = jax.random.split(key, 2 + len(OUTPUT_DIMS))

    # stand-in backbone 1x1 conv: C -> FEATURE_DIM
    wc, bc = linear(keys[0], in_channels, FEATURE_DIM)
    params += [wc, bc]

    # classifier head
    input_dim = FEATURE_DIM
    for i, output_dim in enumerate(OUTPUT_DIMS):
        w, b = linear(keys[1 + i], input_dim, output_dim)
        params += [w, b]
        input_dim = output_dim
    w, b = linear(keys[-1], input_dim, NUM_CLASSES)
    params += [w, b]
    return params


if __name__ == "__main__":
    key = jax.random.PRNGKey(0)
    k_x, k_p = jax.random.split(key)

    B, C, H, W = 2, 4, 16, 16
    x = jax.random.normal(k_x, (B, C, H, W), dtype=jnp.float32)
    params = init_params(k_p, C)

    out = network_forward(x, params)
    out = jax.block_until_ready(out)

    assert out.shape == (B, NUM_CLASSES)
    assert bool(jnp.all(jnp.isfinite(out)))
    # softmax rows must sum to ~1 (EUP approx reciprocal + bf16 MXU operands)
    assert bool(jnp.allclose(jnp.sum(out, axis=-1), 1.0, atol=5e-3))
    # match the pure-JAX reference within bf16/approx tolerances
    ref = reference_forward(x, params)
    assert bool(jnp.allclose(out, ref, atol=2e-2))
    print("KERNEL_OK")
</pallas_src>

<mosaic_0001>
module attributes {stable_mosaic.version = 11 : i64} {
  func.func @kernel(%arg0: i32, %arg1: i32, %arg2: memref<32x128xbf16, #tpu.memory_space<vmem>>, %arg3: memref<32x8xf32, #tpu.memory_space<vmem>>, %arg4: memref<128x1024xbf16, #tpu.memory_space<vmem>>, %arg5: memref<1x1024xf32, #tpu.memory_space<vmem>>, %arg6: memref<1024x64xf32, #tpu.memory_space<vmem>>, %arg7: memref<1x64xf32, #tpu.memory_space<vmem>>, %arg8: memref<64x32xf32, #tpu.memory_space<vmem>>, %arg9: memref<1x32xf32, #tpu.memory_space<vmem>>, %arg10: memref<32x128xf32, #tpu.memory_space<vmem>>, %arg11: memref<1x128xf32, #tpu.memory_space<vmem>>, %arg12: memref<8x128xf32, #tpu.memory_space<vmem>>, %arg13: memref<8x1024xf32, #tpu.memory_space<vmem>>) attributes {dimension_semantics = [#tpu.dimension_semantics<parallel>, #tpu.dimension_semantics<arbitrary>], iteration_bounds = array<i64: 1, 2>, scalar_prefetch = 0 : i64, scratch_operands = 1 : i64, tpu.core_type = #tpu.core_type<tc>, window_params = [{transform_indices = @transform_0, window_bounds = array<i64: 32, 128>}, {transform_indices = @transform_1, window_bounds = array<i64: 32, 8>}, {pipeline_mode = #tpu.pipeline_mode<synchronous>, transform_indices = @transform_2, window_bounds = array<i64: 128, 1024>}, {pipeline_mode = #tpu.pipeline_mode<synchronous>, transform_indices = @transform_3, window_bounds = array<i64: 1, 1024>}, {pipeline_mode = #tpu.pipeline_mode<synchronous>, transform_indices = @transform_4, window_bounds = array<i64: 1024, 64>}, {pipeline_mode = #tpu.pipeline_mode<synchronous>, transform_indices = @transform_5, window_bounds = array<i64: 1, 64>}, {pipeline_mode = #tpu.pipeline_mode<synchronous>, transform_indices = @transform_6, window_bounds = array<i64: 64, 32>}, {pipeline_mode = #tpu.pipeline_mode<synchronous>, transform_indices = @transform_7, window_bounds = array<i64: 1, 32>}, {pipeline_mode = #tpu.pipeline_mode<synchronous>, transform_indices = @transform_8, window_bounds = array<i64: 32, 128>}, {pipeline_mode = #tpu.pipeline_mode<synchronous>, transform_indices = @transform_9, window_bounds = array<i64: 1, 128>}, {transform_indices = @transform_10, window_bounds = array<i64: 8, 128>}]} {
    %c0_i32 = arith.constant 0 : i32
    %0 = arith.cmpi eq, %arg1, %c0_i32 : i32
    %1 = arith.extui %0 : i1 to i32
    %c0_i32_0 = arith.constant 0 : i32
    %2 = arith.cmpi ne, %1, %c0_i32_0 : i32
    scf.if %2 {
      %cst_15 = arith.constant 0.000000e+00 : f32
      %19 = vector.broadcast %cst_15 : f32 to vector<8x1024xf32>
      %c0_16 = arith.constant 0 : index
      %c0_17 = arith.constant 0 : index
      %20 = vector.load %arg13[%c0_16, %c0_17] : memref<8x1024xf32, #tpu.memory_space<vmem>>, vector<8x1024xf32>
      tpu.vector_store %arg13[%c0_16, %c0_17], %19 {strides = array<i32>} : memref<8x1024xf32, #tpu.memory_space<vmem>>, vector<8x1024xf32>,
    } else {
    }
    %c0 = arith.constant 0 : index
    %c0_1 = arith.constant 0 : index
    %3 = vector.load %arg2[%c0, %c0_1] : memref<32x128xbf16, #tpu.memory_space<vmem>>, vector<32x128xbf16>
    %c0_2 = arith.constant 0 : index
    %c0_3 = arith.constant 0 : index
    %4 = vector.load %arg4[%c0_2, %c0_3] : memref<128x1024xbf16, #tpu.memory_space<vmem>>, vector<128x1024xbf16>
    %cst = arith.constant dense<0.000000e+00> : vector<32x1024xf32>
    %5 = tpu.matmul %3, %4, %cst {dimension_numbers = #tpu.dot_dimension_numbers<[1], [0], [0], [1], [0, 0, 1, 1], [], []>} : vector<32x128xbf16>, vector<128x1024xbf16>, vector<32x1024xf32> -> vector<32x1024xf32>
    %c0_4 = arith.constant 0 : index
    %c0_5 = arith.constant 0 : index
    %6 = vector.load %arg5[%c0_4, %c0_5] : memref<1x1024xf32, #tpu.memory_space<vmem>>, vector<1x1024xf32>
    %7 = vector.broadcast %6 : vector<1x1024xf32> to vector<32x1024xf32>
    %8 = arith.addf %5, %7 : vector<32x1024xf32>
    %cst_6 = arith.constant 0.000000e+00 : f32
    %9 = vector.broadcast %cst_6 : f32 to vector<32x1024xf32>
    %10 = arith.maximumf %8, %9 : vector<32x1024xf32>
    %c0_7 = arith.constant 0 : index
    %c0_8 = arith.constant 0 : index
    %11 = vector.load %arg13[%c0_7, %c0_8] : memref<8x1024xf32, #tpu.memory_space<vmem>>, vector<8x1024xf32>
    %c0_9 = arith.constant 0 : index
    %c0_10 = arith.constant 0 : index
    %12 = vector.load %arg3[%c0_9, %c0_10] : memref<32x8xf32, #tpu.memory_space<vmem>>, vector<32x8xf32>
    %cst_11 = arith.constant dense<0.000000e+00> : vector<8x1024xf32>
    %13 = tpu.matmul %12, %10, %cst_11 {dimension_numbers = #tpu.dot_dimension_numbers<[0], [0], [1], [1], [0, 1, 1, 1], [], []>} : vector<32x8xf32>, vector<32x1024xf32>, vector<8x1024xf32> -> vector<8x1024xf32>
    %14 = arith.addf %11, %13 : vector<8x1024xf32>
    %c0_12 = arith.constant 0 : index
    %c0_13 = arith.constant 0 : index
    %15 = vector.load %arg13[%c0_12, %c0_13] : memref<8x1024xf32, #tpu.memory_space<vmem>>, vector<8x1024xf32>
    tpu.vector_store %arg13[%c0_12, %c0_13], %14 {strides = array<i32>} : memref<8x1024xf32, #tpu.memory_space<vmem>>, vector<8x1024xf32>,
    %c1_i32 = arith.constant 1 : i32
    %16 = arith.cmpi eq, %arg1, %c1_i32 : i32
    %17 = arith.extui %16 : i1 to i32
    %c0_i32_14 = arith.constant 0 : i32
    %18 = arith.cmpi ne, %17, %c0_i32_14 : i32
    scf.if %18 {
      %c0_15 = arith.constant 0 : index
      %c0_16 = arith.constant 0 : index
      %19 = vector.load %arg13[%c0_15, %c0_16] : memref<8x1024xf32, #tpu.memory_space<vmem>>, vector<8x1024xf32>
      %c0_17 = arith.constant 0 : index
      %c0_18 = arith.constant 0 : index
      %20 = vector.load %arg6[%c0_17, %c0_18] : memref<1024x64xf32, #tpu.memory_space<vmem>>, vector<1024x64xf32>
      %c0_19 = arith.constant 0 : index
      %c0_20 = arith.constant 0 : index
      %21 = vector.load %arg7[%c0_19, %c0_20] : memref<1x64xf32, #tpu.memory_space<vmem>>, vector<1x64xf32>
      %cst_21 = arith.constant dense<0.000000e+00> : vector<8x64xf32>
      %22 = tpu.matmul %19, %20, %cst_21 {dimension_numbers = #tpu.dot_dimension_numbers<[1], [0], [0], [1], [0, 0, 1, 1], [], []>} : vector<8x1024xf32>, vector<1024x64xf32>, vector<8x64xf32> -> vector<8x64xf32>
      %23 = vector.broadcast %21 : vector<1x64xf32> to vector<8x64xf32>
      %24 = arith.addf %22, %23 : vector<8x64xf32>
      %cst_22 = arith.constant 0.000000e+00 : f32
      %25 = vector.broadcast %cst_22 : f32 to vector<8x64xf32>
      %26 = arith.maximumf %24, %25 : vector<8x64xf32>
      %c0_23 = arith.constant 0 : index
      %c0_24 = arith.constant 0 : index
      %27 = vector.load %arg8[%c0_23, %c0_24] : memref<64x32xf32, #tpu.memory_space<vmem>>, vector<64x32xf32>
      %c0_25 = arith.constant 0 : index
      %c0_26 = arith.constant 0 : index
      %28 = vector.load %arg9[%c0_25, %c0_26] : memref<1x32xf32, #tpu.memory_space<vmem>>, vector<1x32xf32>
      %cst_27 = arith.constant dense<0.000000e+00> : vector<8x32xf32>
      %29 = tpu.matmul %26, %27, %cst_27 {dimension_numbers = #tpu.dot_dimension_numbers<[1], [0], [0], [1], [0, 0, 1, 1], [], []>} : vector<8x64xf32>, vector<64x32xf32>, vector<8x32xf32> -> vector<8x32xf32>
      %30 = vector.broadcast %28 : vector<1x32xf32> to vector<8x32xf32>
      %31 = arith.addf %29, %30 : vector<8x32xf32>
      %cst_28 = arith.constant 0.000000e+00 : f32
      %32 = vector.broadcast %cst_28 : f32 to vector<8x32xf32>
      %33 = arith.maximumf %31, %32 : vector<8x32xf32>
      %c0_29 = arith.constant 0 : index
      %c0_30 = arith.constant 0 : index
      %34 = vector.load %arg10[%c0_29, %c0_30] : memref<32x128xf32, #tpu.memory_space<vmem>>, vector<32x128xf32>
      %c0_31 = arith.constant 0 : index
      %c0_32 = arith.constant 0 : index
      %35 = vector.load %arg11[%c0_31, %c0_32] : memref<1x128xf32, #tpu.memory_space<vmem>>, vector<1x128xf32>
      %cst_33 = arith.constant dense<0.000000e+00> : vector<8x128xf32>
      %36 = tpu.matmul %33, %34, %cst_33 {dimension_numbers = #tpu.dot_dimension_numbers<[1], [0], [0], [1], [0, 0, 1, 1], [], []>} : vector<8x32xf32>, vector<32x128xf32>, vector<8x128xf32> -> vector<8x128xf32>
      %37 = vector.broadcast %35 : vector<1x128xf32> to vector<8x128xf32>
      %38 = arith.addf %36, %37 : vector<8x128xf32>
      %cst_34 = arith.constant dense<0xFF800000> : vector<8xf32>
      %39 = vector.multi_reduction <maximumf>, %38, %cst_34 [1] : vector<8x128xf32> to vector<8xf32>
      %40 = vector.shape_cast %39 : vector<8xf32> to vector<8x1xf32>
      %41 = vector.broadcast %40 : vector<8x1xf32> to vector<8x128xf32>
      %42 = arith.subf %38, %41 : vector<8x128xf32>
      %43 = math.exp %42 : vector<8x128xf32>
      %cst_35 = arith.constant dense<0.000000e+00> : vector<8xf32>
      %44 = vector.multi_reduction <add>, %43, %cst_35 [1] : vector<8x128xf32> to vector<8xf32>
      %45 = vector.shape_cast %44 : vector<8xf32> to vector<8x1xf32>
      %46 = tpu.reciprocal %45 {approx = true} : vector<8x1xf32> -> vector<8x1xf32>
      %47 = vector.broadcast %46 : vector<8x1xf32> to vector<8x128xf32>
      %48 = arith.mulf %43, %47 : vector<8x128xf32>
      %c0_36 = arith.constant 0 : index
      %c0_37 = arith.constant 0 : index
      %49 = vector.load %arg12[%c0_36, %c0_37] : memref<8x128xf32, #tpu.memory_space<vmem>>, vector<8x128xf32>
      tpu.vector_store %arg12[%c0_36, %c0_37], %48 {strides = array<i32>} : memref<8x128xf32, #tpu.memory_space<vmem>>, vector<8x128xf32>,
    } else {
    }
    return
  }
  func.func @transform_0(%arg0: i32, %arg1: i32) -> (i32, i32) {
    %c2_i32 = arith.constant 2 : i32
    %0 = arith.muli %arg0, %c2_i32 : i32
    %1 = arith.addi %0, %arg1 : i32
    %c0_i32 = arith.constant 0 : i32
    %c0_i32_0 = arith.constant 0 : i32
    return %1, %c0_i32 : i32, i32
  }
  func.func @transform_1(%arg0: i32, %arg1: i32) -> (i32, i32) {
    %c0_i32 = arith.constant 0 : i32
    %c0_i32_0 = arith.constant 0 : i32
    return %arg1, %c0_i32 : i32, i32
  }
  func.func @transform_2(%arg0: i32, %arg1: i32) -> (i32, i32) {
    %c0_i32 = arith.constant 0 : i32
    %c0_i32_0 = arith.constant 0 : i32
    %c0_i32_1 = arith.constant 0 : i32
    return %c0_i32, %c0_i32_0 : i32, i32
  }
  func.func @transform_3(%arg0: i32, %arg1: i32) -> (i32, i32) {
    %c0_i32 = arith.constant 0 : i32
    %c0_i32_0 = arith.constant 0 : i32
    %c0_i32_1 = arith.constant 0 : i32
    return %c0_i32, %c0_i32_0 : i32, i32
  }
  func.func @transform_4(%arg0: i32, %arg1: i32) -> (i32, i32) {
    %c0_i32 = arith.constant 0 : i32
    %c0_i32_0 = arith.constant 0 : i32
    %c0_i32_1 = arith.constant 0 : i32
    return %c0_i32, %c0_i32_0 : i32, i32
  }
  func.func @transform_5(%arg0: i32, %arg1: i32) -> (i32, i32) {
    %c0_i32 = arith.constant 0 : i32
    %c0_i32_0 = arith.constant 0 : i32
    %c0_i32_1 = arith.constant 0 : i32
    return %c0_i32, %c0_i32_0 : i32, i32
  }
  func.func @transform_6(%arg0: i32, %arg1: i32) -> (i32, i32) {
    %c0_i32 = arith.constant 0 : i32
    %c0_i32_0 = arith.constant 0 : i32
    %c0_i32_1 = arith.constant 0 : i32
    return %c0_i32, %c0_i32_0 : i32, i32
  }
  func.func @transform_7(%arg0: i32, %arg1: i32) -> (i32, i32) {
    %c0_i32 = arith.constant 0 : i32
    %c0_i32_0 = arith.constant 0 : i32
    %c0_i32_1 = arith.constant 0 : i32
    return %c0_i32, %c0_i32_0 : i32, i32
  }
  func.func @transform_8(%arg0: i32, %arg1: i32) -> (i32, i32) {
    %c0_i32 = arith.constant 0 : i32
    %c0_i32_0 = arith.constant 0 : i32
    %c0_i32_1 = arith.constant 0 : i32
    return %c0_i32, %c0_i32_0 : i32, i32
  }
  func.func @transform_9(%arg0: i32, %arg1: i32) -> (i32, i32) {
    %c0_i32 = arith.constant 0 : i32
    %c0_i32_0 = arith.constant 0 : i32
    %c0_i32_1 = arith.constant 0 : i32
    return %c0_i32, %c0_i32_0 : i32, i32
  }
  func.func @transform_10(%arg0: i32, %arg1: i32) -> (i32, i32) {
    %c0_i32 = arith.constant 0 : i32
    %c0_i32_0 = arith.constant 0 : i32
    return %arg0, %c0_i32 : i32, i32
  }
}

</mosaic_0001>

<llo_original>
// kernel: tpu_custom_call.1
$region0: #{tpu_custom_call.1}
  #allocation0 [shape = 'u32[]', space=smem, size = 0x4, offset = 0x4, fixed_abs, tag = 'smem constant byte address 0x4 - core index']
  #allocation1 [shape = 'u32[144,128]{1,0:T(1,128)}', space=vmem, size = 0x12000, scoped, tag = 'internal scratch']
  #allocation2 [shape = 'f32[8,1024]{1,0:T(8,128)}', space=vmem, size = 0x8000, scoped, tag = 'scratch operand']
  %s0 = inlined_call_operand.vmem [shape: bf16[64,128], index: 0, kind: input, shape index: {}]
  %s1 = inlined_call_operand.vmem [shape: f32[64,8], index: 1, kind: input, shape index: {}]
  %s2 = inlined_call_operand.vmem [shape: bf16[128,1024], index: 2, kind: input, shape index: {}]
  %s3 = inlined_call_operand.vmem [shape: f32[1,1024], index: 3, kind: input, shape index: {}]
  %s4 = inlined_call_operand.vmem [shape: f32[1024,64], index: 4, kind: input, shape index: {}]
  %s5 = inlined_call_operand.vmem [shape: f32[1,64], index: 5, kind: input, shape index: {}]
  %s6 = inlined_call_operand.vmem [shape: f32[64,32], index: 6, kind: input, shape index: {}]
  %s7 = inlined_call_operand.vmem [shape: f32[1,32], index: 7, kind: input, shape index: {}]
  %s8 = inlined_call_operand.vmem [shape: f32[32,128], index: 8, kind: input, shape index: {}]
  %s9 = inlined_call_operand.vmem [shape: f32[1,128], index: 9, kind: input, shape index: {}]
  %s10 = inlined_call_operand.hbm [shape: f32[8,128], index: 10, kind: output, shape index: {}]
  %s11 = sld [smem:[#allocation0]]
  $region81: #{tpu_custom_call.1} parent=0
    _
  %s13 = ssub.s32 1, %s11
  %s14 = scalar_select 0, %s13, %s11
  $region1: #{tpu_custom_call.1} parent=0
    #allocation3 [shape = 'u8[4096]{0}', space=vmem, size = 0x1000, scoped, tag = 'output window, operand 0, single buffered']
    #allocation4 [shape = 's32[2]{0}', space=sflag, size = 0x8, scoped, tag = 'scoped memory for tpu_custom_call.1']
    %15 = vsyncpa [#allocation4], 0
    loop: start=0, step=1, limit=4
    $region2: #{tpu_custom_call.1} parent=1 // loop_pre_header
      _
    $region3: #{tpu_custom_call.1} parent=1 // loop_header
      %s17 = sphi 0, %s21
      %p18 = scmp.ge.s32.totalorder %s17, 4
      %s24 = sphi 0, %s36
      %s25 = sphi 0, %s32
      %s26 = sphi 0, %s24
      %s27 = sphi 0, %s25
      %s28 = sphi 0, %s26
      %s29 = sphi 0, %s27
      %s43 = sphi 0, %s45
      %s46 = sphi 0, %s43
      %s47 = sphi 0, %s46
      %s63 = sphi 0, %s47
      %s69 = sphi 0, %s71
      %s72 = sphi 0, %s69
      %s73 = sphi 0, %s72
      %s89 = sphi 0, %s73
      %s93 = sphi 0, %s93
      %s95 = sphi 0, %s93
      %s96 = sphi 0, %s95
      %s110 = sphi 0, %s96
      %s114 = sphi 0, %s114
      %s116 = sphi 0, %s114
      %s117 = sphi 0, %s116
      %s131 = sphi 0, %s117
      %s135 = sphi 0, %s135
      %s137 = sphi 0, %s135
      %s138 = sphi 0, %s137
      %s152 = sphi 0, %s138
      %s156 = sphi 0, %s156
      %s158 = sphi 0, %s156
      %s159 = sphi 0, %s158
      %s173 = sphi 0, %s159
      %s177 = sphi 0, %s177
      %s179 = sphi 0, %s177
      %s180 = sphi 0, %s179
      %s194 = sphi 0, %s180
      %s198 = sphi 0, %s198
      %s200 = sphi 0, %s198
      %s201 = sphi 0, %s200
      %s215 = sphi 0, %s201
      %s219 = sphi 0, %s219
      %s221 = sphi 0, %s219
      %s222 = sphi 0, %s221
      %s236 = sphi 0, %s222
      %s240 = sphi 0, %s240
      %s242 = sphi 0, %s240
      %s243 = sphi 0, %s242
      %s257 = sphi 0, %s243
      %s263 = sphi 0, %s265
      %s266 = sphi 0, %s263
      %s267 = sphi 0, %s266
      %s283 = sphi 0, %s267
    $region4: #{tpu_custom_call.1} parent=1 // loop_header_branch
      %20 = sbr.rel (%p18) target = $region8
    $region5: #{tpu_custom_call.1} parent=1 // loop_body
      %s22 = ssub.s32 %s17, 1
      %s23 = ssub.s32 %s17, 2
      %s30 = sadd.s32 1, %s25
      %p31 = scmp.ge.s32.totalorder %s30, 2
      %s32 = scalar_select %p31, 0, %s30
      %s33 = sadd.s32 1, %s24
      %s34 = scalar_select %p31, %s33, %s24
      %p35 = scmp.ge.s32.totalorder %s34, 1
      %s36 = scalar_select %p35, 0, %s34
      %s37 = smul.u32 %s24, 2
      %s38 = sadd.s32 %s37, %s25
      %s39 = smul.u32 %s36, 2
      %s40 = sadd.s32 %s39, %s32
      %s41 = ssub.s32 %s38, %s40
      %p42 = scmp.eq.s32.totalorder %s41, 0
      %s44 = sadd.s32 %s43, 1
      %s45 = scalar_select %p42, %s43, %s44
      %p48 = pneg %p42
      %p49 = scmp.eq.s32.totalorder %s17, 1
      %p50 = por %p48, %p49
      %p51 = scmp.ne.s32.totalorder %s43, %s46
      %p52 = scmp.eq.s32.totalorder %s17, 0
      %p53 = por %p51, %p52
      %p54 = scmp.ne.s32.totalorder %s43, %s46
      %p55 = scmp.eq.s32.totalorder %s22, 1
      %p56 = por %p54, %p55
      %p57 = scmp.ne.s32.totalorder %s46, %s47
      %p58 = scmp.eq.s32.totalorder %s22, 0
      %p59 = por %p57, %p58
      %p60 = scmp.ne.s32.totalorder %s46, %s47
      %p61 = scmp.eq.s32.totalorder %s23, 1
      %p62 = por %p60, %p61
      %p64 = scmp.ne.s32.totalorder %s47, %s63
      %p65 = scmp.eq.s32.totalorder %s23, 0
      %p66 = por %p64, %p65
      %s67 = ssub.s32 %s25, %s32
      %p68 = scmp.eq.s32.totalorder %s67, 0
      %s70 = sadd.s32 %s69, 1
      %s71 = scalar_select %p68, %s69, %s70
      %p74 = pneg %p68
      %p75 = scmp.eq.s32.totalorder %s17, 1
      %p76 = por %p74, %p75
      %p77 = scmp.ne.s32.totalorder %s69, %s72
      %p78 = scmp.eq.s32.totalorder %s17, 0
      %p79 = por %p77, %p78
      %p80 = scmp.ne.s32.totalorder %s69, %s72
      %p81 = scmp.eq.s32.totalorder %s22, 1
      %p82 = por %p80, %p81
      %p83 = scmp.ne.s32.totalorder %s72, %s73
      %p84 = scmp.eq.s32.totalorder %s22, 0
      %p85 = por %p83, %p84
      %p86 = scmp.ne.s32.totalorder %s72, %s73
      %p87 = scmp.eq.s32.totalorder %s23, 1
      %p88 = por %p86, %p87
      %p90 = scmp.ne.s32.totalorder %s73, %s89
      %p91 = scmp.eq.s32.totalorder %s23, 0
      %p92 = por %p90, %p91
      %s94 = sadd.s32 %s93, 1
      %p97 = scmp.eq.s32.totalorder %s17, 1
      %p98 = scmp.ne.s32.totalorder %s93, %s95
      %p99 = scmp.eq.s32.totalorder %s17, 0
      %p100 = por %p98, %p99
      %p101 = scmp.ne.s32.totalorder %s93, %s95
      %p102 = scmp.eq.s32.totalorder %s22, 1
      %p103 = por %p101, %p102
      %p104 = scmp.ne.s32.totalorder %s95, %s96
      %p105 = scmp.eq.s32.totalorder %s22, 0
      %p106 = por %p104, %p105
      %p107 = scmp.ne.s32.totalorder %s95, %s96
      %p108 = scmp.eq.s32.totalorder %s23, 1
      %p109 = por %p107, %p108
      %p111 = scmp.ne.s32.totalorder %s96, %s110
      %p112 = scmp.eq.s32.totalorder %s23, 0
      %p113 = por %p111, %p112
      %s115 = sadd.s32 %s114, 1
      %p118 = scmp.eq.s32.totalorder %s17, 1
      %p119 = scmp.ne.s32.totalorder %s114, %s116
      %p120 = scmp.eq.s32.totalorder %s17, 0
      %p121 = por %p119, %p120
      %p122 = scmp.ne.s32.totalorder %s114, %s116
      %p123 = scmp.eq.s32.totalorder %s22, 1
      %p124 = por %p122, %p123
      %p125 = scmp.ne.s32.totalorder %s116, %s117
      %p126 = scmp.eq.s32.totalorder %s22, 0
      %p127 = por %p125, %p126
      %p128 = scmp.ne.s32.totalorder %s116, %s117
      %p129 = scmp.eq.s32.totalorder %s23, 1
      %p130 = por %p128, %p129
      %p132 = scmp.ne.s32.totalorder %s117, %s131
      %p133 = scmp.eq.s32.totalorder %s23, 0
      %p134 = por %p132, %p133
      %s136 = sadd.s32 %s135, 1
      %p139 = scmp.eq.s32.totalorder %s17, 1
      %p140 = scmp.ne.s32.totalorder %s135, %s137
      %p141 = scmp.eq.s32.totalorder %s17, 0
      %p142 = por %p140, %p141
      %p143 = scmp.ne.s32.totalorder %s135, %s137
      %p144 = scmp.eq.s32.totalorder %s22, 1
      %p145 = por %p143, %p144
      %p146 = scmp.ne.s32.totalorder %s137, %s138
      %p147 = scmp.eq.s32.totalorder %s22, 0
      %p148 = por %p146, %p147
      %p149 = scmp.ne.s32.totalorder %s137, %s138
      %p150 = scmp.eq.s32.totalorder %s23, 1
      %p151 = por %p149, %p150
      %p153 = scmp.ne.s32.totalorder %s138, %s152
      %p154 = scmp.eq.s32.totalorder %s23, 0
      %p155 = por %p153, %p154
      %s157 = sadd.s32 %s156, 1
      %p160 = scmp.eq.s32.totalorder %s17, 1
      %p161 = scmp.ne.s32.totalorder %s156, %s158
      %p162 = scmp.eq.s32.totalorder %s17, 0
      %p163 = por %p161, %p162
      %p164 = scmp.ne.s32.totalorder %s156, %s158
      %p165 = scmp.eq.s32.totalorder %s22, 1
      %p166 = por %p164, %p165
      %p167 = scmp.ne.s32.totalorder %s158, %s159
      %p168 = scmp.eq.s32.totalorder %s22, 0
      %p169 = por %p167, %p168
      %p170 = scmp.ne.s32.totalorder %s158, %s159
      %p171 = scmp.eq.s32.totalorder %s23, 1
      %p172 = por %p170, %p171
      %p174 = scmp.ne.s32.totalorder %s159, %s173
      %p175 = scmp.eq.s32.totalorder %s23, 0
      %p176 = por %p174, %p175
      %s178 = sadd.s32 %s177, 1
      %p181 = scmp.eq.s32.totalorder %s17, 1
      %p182 = scmp.ne.s32.totalorder %s177, %s179
      %p183 = scmp.eq.s32.totalorder %s17, 0
      %p184 = por %p182, %p183
      %p185 = scmp.ne.s32.totalorder %s177, %s179
      %p186 = scmp.eq.s32.totalorder %s22, 1
      %p187 = por %p185, %p186
      %p188 = scmp.ne.s32.totalorder %s179, %s180
      %p189 = scmp.eq.s32.totalorder %s22, 0
      %p190 = por %p188, %p189
      %p191 = scmp.ne.s32.totalorder %s179, %s180
      %p192 = scmp.eq.s32.totalorder %s23, 1
      %p193 = por %p191, %p192
      %p195 = scmp.ne.s32.totalorder %s180, %s194
      %p196 = scmp.eq.s32.totalorder %s23, 0
      %p197 = por %p195, %p196
      %s199 = sadd.s32 %s198, 1
      %p202 = scmp.eq.s32.totalorder %s17, 1
      %p203 = scmp.ne.s32.totalorder %s198, %s200
      %p204 = scmp.eq.s32.totalorder %s17, 0
      %p205 = por %p203, %p204
      %p206 = scmp.ne.s32.totalorder %s198, %s200
      %p207 = scmp.eq.s32.totalorder %s22, 1
      %p208 = por %p206, %p207
      %p209 = scmp.ne.s32.totalorder %s200, %s201
      %p210 = scmp.eq.s32.totalorder %s22, 0
      %p211 = por %p209, %p210
      %p212 = scmp.ne.s32.totalorder %s200, %s201
      %p213 = scmp.eq.s32.totalorder %s23, 1
      %p214 = por %p212, %p213
      %p216 = scmp.ne.s32.totalorder %s201, %s215
      %p217 = scmp.eq.s32.totalorder %s23, 0
      %p218 = por %p216, %p217
      %s220 = sadd.s32 %s219, 1
      %p223 = scmp.eq.s32.totalorder %s17, 1
      %p224 = scmp.ne.s32.totalorder %s219, %s221
      %p225 = scmp.eq.s32.totalorder %s17, 0
      %p226 = por %p224, %p225
      %p227 = scmp.ne.s32.totalorder %s219, %s221
      %p228 = scmp.eq.s32.totalorder %s22, 1
      %p229 = por %p227, %p228
      %p230 = scmp.ne.s32.totalorder %s221, %s222
      %p231 = scmp.eq.s32.totalorder %s22, 0
      %p232 = por %p230, %p231
      %p233 = scmp.ne.s32.totalorder %s221, %s222
      %p234 = scmp.eq.s32.totalorder %s23, 1
      %p235 = por %p233, %p234
      %p237 = scmp.ne.s32.totalorder %s222, %s236
      %p238 = scmp.eq.s32.totalorder %s23, 0
      %p239 = por %p237, %p238
      %s241 = sadd.s32 %s240, 1
      %p244 = scmp.eq.s32.totalorder %s17, 1
      %p245 = scmp.ne.s32.totalorder %s240, %s242
      %p246 = scmp.eq.s32.totalorder %s17, 0
      %p247 = por %p245, %p246
      %p248 = scmp.ne.s32.totalorder %s240, %s242
      %p249 = scmp.eq.s32.totalorder %s22, 1
      %p250 = por %p248, %p249
      %p251 = scmp.ne.s32.totalorder %s242, %s243
      %p252 = scmp.eq.s32.totalorder %s22, 0
      %p253 = por %p251, %p252
      %p254 = scmp.ne.s32.totalorder %s242, %s243
      %p255 = scmp.eq.s32.totalorder %s23, 1
      %p256 = por %p254, %p255
      %p258 = scmp.ne.s32.totalorder %s243, %s257
      %p259 = scmp.eq.s32.totalorder %s23, 0
      %p260 = por %p258, %p259
      %s261 = ssub.s32 %s24, %s36
      %p262 = scmp.eq.s32.totalorder %s261, 0
      %s264 = sadd.s32 %s263, 1
      %s265 = scalar_select %p262, %s263, %s264
      %p268 = pneg %p262
      %p269 = scmp.eq.s32.totalorder %s17, 1
      %p270 = por %p268, %p269
      %p271 = scmp.ne.s32.totalorder %s263, %s266
      %p272 = scmp.eq.s32.totalorder %s17, 0
      %p273 = por %p271, %p272
      %p274 = scmp.ne.s32.totalorder %s263, %s266
      %p275 = scmp.eq.s32.totalorder %s22, 1
      %p276 = por %p274, %p275
      %p277 = scmp.ne.s32.totalorder %s266, %s267
      %p278 = scmp.eq.s32.totalorder %s22, 0
      %p279 = por %p277, %p278
      %p280 = scmp.ne.s32.totalorder %s266, %s267
      %p281 = scmp.eq.s32.totalorder %s23, 1
      %p282 = por %p280, %p281
      %p284 = scmp.ne.s32.totalorder %s267, %s283
      %p285 = scmp.eq.s32.totalorder %s23, 0
      %p286 = por %p284, %p285
      %p287 = scmp.le.s32.totalorder 1, %s17
      %p288 = scmp.lt.s32.totalorder %s17, 3
      %p289 = pnand %p287, %p288
      %p290 = pneg %p289
      // Predicated region
      $region9: #{tpu_custom_call.1} parent=5 // pred_check
        _
      $region10: #{tpu_custom_call.1} parent=5 // pred_check_branch
        %292 = sbr.rel (%p289) target = $region12
      $region11: #{tpu_custom_call.1} parent=5 // pred_region
        %s293 = ssub.s32 %s17, 1
        // Predicated region
        $region13: #{tpu_custom_call.1} parent=11 // pred_check
          %p294 = pneg %p106
        $region14: #{tpu_custom_call.1} parent=11 // pred_check_branch
          %296 = sbr.rel (%p294) target = $region16
        $region15: #{tpu_custom_call.1} parent=11 // pred_region
          _
        $region16: #{tpu_custom_call.1} parent=11 // pred_fallthru
          _
        // Predicated region
        $region17: #{tpu_custom_call.1} parent=11 // pred_check
          %p297 = pneg %p127
        $region18: #{tpu_custom_call.1} parent=11 // pred_check_branch
          %299 = sbr.rel (%p297) target = $region20
        $region19: #{tpu_custom_call.1} parent=11 // pred_region
          _
        $region20: #{tpu_custom_call.1} parent=11 // pred_fallthru
          _
        // Predicated region
        $region21: #{tpu_custom_call.1} parent=11 // pred_check
          %p300 = pneg %p148
        $region22: #{tpu_custom_call.1} parent=11 // pred_check_branch
          %302 = sbr.rel (%p300) target = $region24
        $region23: #{tpu_custom_call.1} parent=11 // pred_region
          _
        $region24: #{tpu_custom_call.1} parent=11 // pred_fallthru
          _
        // Predicated region
        $region25: #{tpu_custom_call.1} parent=11 // pred_check
          %p303 = pneg %p169
        $region26: #{tpu_custom_call.1} parent=11 // pred_check_branch
          %305 = sbr.rel (%p303) target = $region28
        $region27: #{tpu_custom_call.1} parent=11 // pred_region
          _
        $region28: #{tpu_custom_call.1} parent=11 // pred_fallthru
          _
        // Predicated region
        $region29: #{tpu_custom_call.1} parent=11 // pred_check
          %p306 = pneg %p190
        $region30: #{tpu_custom_call.1} parent=11 // pred_check_branch
          %308 = sbr.rel (%p306) target = $region32
        $region31: #{tpu_custom_call.1} parent=11 // pred_region
          _
        $region32: #{tpu_custom_call.1} parent=11 // pred_fallthru
          _
        // Predicated region
        $region33: #{tpu_custom_call.1} parent=11 // pred_check
          %p309 = pneg %p211
        $region34: #{tpu_custom_call.1} parent=11 // pred_check_branch
          %311 = sbr.rel (%p309) target = $region36
        $region35: #{tpu_custom_call.1} parent=11 // pred_region
          _
        $region36: #{tpu_custom_call.1} parent=11 // pred_fallthru
          _
        // Predicated region
        $region37: #{tpu_custom_call.1} parent=11 // pred_check
          %p312 = pneg %p232
        $region38: #{tpu_custom_call.1} parent=11 // pred_check_branch
          %314 = sbr.rel (%p312) target = $region40
        $region39: #{tpu_custom_call.1} parent=11 // pred_region
          _
        $region40: #{tpu_custom_call.1} parent=11 // pred_fallthru
          _
        // Predicated region
        $region41: #{tpu_custom_call.1} parent=11 // pred_check
          %p315 = pneg %p253
        $region42: #{tpu_custom_call.1} parent=11 // pred_check_branch
          %317 = sbr.rel (%p315) target = $region44
        $region43: #{tpu_custom_call.1} parent=11 // pred_region
          _
        $region44: #{tpu_custom_call.1} parent=11 // pred_fallthru
          _
      $region12: #{tpu_custom_call.1} parent=5 // pred_fallthru
        _
      %p318 = scmp.lt.s32.totalorder %s17, 2
      // Predicated region
      $region45: #{tpu_custom_call.1} parent=5 // pred_check
        %p319 = pneg %p318
      $region46: #{tpu_custom_call.1} parent=5 // pred_check_branch
        %321 = sbr.rel (%p319) target = $region48
      $region47: #{tpu_custom_call.1} parent=5 // pred_region
        // Predicated region
        $region49: #{tpu_custom_call.1} parent=47 // pred_check
          %p322 = pneg %p53
        $region50: #{tpu_custom_call.1} parent=47 // pred_check_branch
          %324 = sbr.rel (%p322) target = $region52
        $region51: #{tpu_custom_call.1} parent=47 // pred_region
          %s325 = smul.u32 %s24, 2
          %s326 = sadd.s32 %s325, %s25
          %s327 = smul.u32 4, %s326
          %p328 = scmp.lt.s32.totalorder %s327, 7
          %s329 = scalar_select %p328, %s327, 7
          %s330 = smul.addr %s329, 4
          %s331 = scalar_lea.vmem %s0, %s330
          %s332 = smul.u32 %s24, 2
          %s333 = sadd.s32 %s332, %s25
          %s334 = smul.u32 4, %s333
        $region52: #{tpu_custom_call.1} parent=47 // pred_fallthru
          _
        // Predicated region
        $region53: #{tpu_custom_call.1} parent=47 // pred_check
          %p335 = pneg %p79
        $region54: #{tpu_custom_call.1} parent=47 // pred_check_branch
          %337 = sbr.rel (%p335) target = $region56
        $region55: #{tpu_custom_call.1} parent=47 // pred_region
          %s338 = smul.u32 4, %s25
          %p339 = scmp.lt.s32.totalorder %s338, 7
          %s340 = scalar_select %p339, %s338, 7
          %s341 = smul.addr %s340, 8
          %s342 = scalar_lea.vmem %s1, %s341
          %s343 = smul.u32 4, %s25
        $region56: #{tpu_custom_call.1} parent=47 // pred_fallthru
          _
      $region48: #{tpu_custom_call.1} parent=5 // pred_fallthru
        _
      %p344 = scmp.le.s32.totalorder 1, %s17
      %p345 = scmp.lt.s32.totalorder %s17, 3
      %p346 = pnand %p344, %p345
      %p347 = pneg %p346
      // Predicated region
      $region57: #{tpu_custom_call.1} parent=5 // pred_check
        _
      $region58: #{tpu_custom_call.1} parent=5 // pred_check_branch
        %349 = sbr.rel (%p346) target = $region60
      $region59: #{tpu_custom_call.1} parent=5 // pred_region
        %s350 = ssub.s32 %s17, 1
        %s351 = smul.u32 %s26, 2
        %s352 = sadd.s32 %s351, %s27
        %s353 = smul.u32 4, %s352
        %p354 = scmp.lt.s32.totalorder %s353, 7
        %s355 = scalar_select %p354, %s353, 7
        %s356 = smul.addr %s355, 4
        %s357 = scalar_lea.vmem %s0, %s356
        %p358 = pneg %p59
        %p359 = pneg %p56
        %s360 = smul.u32 4, %s27
        %p361 = scmp.lt.s32.totalorder %s360, 7
        %s362 = scalar_select %p361, %s360, 7
        %s363 = smul.addr %s362, 8
        %s364 = scalar_lea.vmem %s1, %s363
        %p365 = pneg %p85
        %p366 = pneg %p82
        %p367 = pneg %p106
        %p368 = pneg %p103
        %p369 = pneg %p127
        %p370 = pneg %p124
        %p371 = pneg %p148
        %p372 = pneg %p145
        %p373 = pneg %p169
        %p374 = pneg %p166
        %p375 = pneg %p190
        %p376 = pneg %p187
        %p377 = pneg %p211
        %p378 = pneg %p208
        %p379 = pneg %p232
        %p380 = pneg %p229
        %p381 = pneg %p253
        %p382 = pneg %p250
        %p383 = pneg %p279
        %p384 = pneg %p276
        %s385 = smul.u32 %s26, 2
        %s386 = sadd.s32 %s385, %s27
        %s387 = smul.u32 4, %s386
        %p388 = scmp.lt.s32.totalorder %s387, 7
        %s389 = scalar_select %p388, %s387, 7
        %s390 = smul.addr %s389, 4
        %s391 = scalar_lea.vmem %s0, %s390
        %s392 = smul.u32 %s26, 2
        %s393 = sadd.s32 %s392, %s27
        %s394 = smul.u32 4, %s393
        %s395 = smul.u32 4, %s27
        %p396 = scmp.lt.s32.totalorder %s395, 7
        %s397 = scalar_select %p396, %s395, 7
        %s398 = smul.addr %s397, 8
        %s399 = scalar_lea.vmem %s1, %s398
        %s400 = smul.u32 4, %s27
        %p402 = scmp.eq.s32.totalorder %s27, 0
        // Predicated region
        $region61: #{tpu_custom_call.1} parent=59 // pred_check
          %p403 = pneg %p402
        $region62: #{tpu_custom_call.1} parent=59 // pred_check_branch
          %405 = sbr.rel (%p403) target = $region64
        $region63: #{tpu_custom_call.1} parent=59 // pred_region
          %406 = vst [vmem:[#allocation2] sm:$0xff] 0.0
          %407 = vst [vmem:[#allocation2 + $0x8] sm:$0xff] 0.0
          %408 = vst [vmem:[#allocation2 + $0x10] sm:$0xff] 0.0
          %409 = vst [vmem:[#allocation2 + $0x18] sm:$0xff] 0.0
          %410 = vst [vmem:[#allocation2 + $0x20] sm:$0xff] 0.0
          %411 = vst [vmem:[#allocation2 + $0x28] sm:$0xff] 0.0
          %412 = vst [vmem:[#allocation2 + $0x30] sm:$0xff] 0.0
          %413 = vst [vmem:[#allocation2 + $0x38] sm:$0xff] 0.0
        $region64: #{tpu_custom_call.1} parent=59 // pred_fallthru
          _
        %v414 = vld [vmem:[%s391] sm:$0xf]
        %v415 = vld [vmem:[%s391 + $0x4] sm:$0xf]
        %v416 = vld [vmem:[%s391 + $0x8] sm:$0xf]
        %v417 = vld [vmem:[%s391 + $0xc] sm:$0xf]
        %v418 = vld [vmem:[%s2] sm:$0xff]
        %v419 = vld [vmem:[%s2 + $0x8] sm:$0xff]
        %v420 = vld [vmem:[%s2 + $0x10] sm:$0xff]
        %v421 = vld [vmem:[%s2 + $0x18] sm:$0xff]
        %v422 = vld [vmem:[%s2 + $0x20] sm:$0xff]
        %v423 = vld [vmem:[%s2 + $0x28] sm:$0xff]
        %v424 = vld [vmem:[%s2 + $0x30] sm:$0xff]
        %v425 = vld [vmem:[%s2 + $0x38] sm:$0xff]
        %v426 = vld [vmem:[%s2 + $0x40] sm:$0xff]
        %v427 = vld [vmem:[%s2 + $0x48] sm:$0xff]
        %v428 = vld [vmem:[%s2 + $0x50] sm:$0xff]
        %v429 = vld [vmem:[%s2 + $0x58] sm:$0xff]
        %v430 = vld [vmem:[%s2 + $0x60] sm:$0xff]
        %v431 = vld [vmem:[%s2 + $0x68] sm:$0xff]
        %v432 = vld [vmem:[%s2 + $0x70] sm:$0xff]
        %v433 = vld [vmem:[%s2 + $0x78] sm:$0xff]
        %v434 = vld [vmem:[%s2 + $0x80] sm:$0xff]
        %v435 = vld [vmem:[%s2 + $0x88] sm:$0xff]
        %v436 = vld [vmem:[%s2 + $0x90] sm:$0xff]
        %v437 = vld [vmem:[%s2 + $0x98] sm:$0xff]
        %v438 = vld [vmem:[%s2 + $0xa0] sm:$0xff]
        %v439 = vld [vmem:[%s2 + $0xa8] sm:$0xff]
        %v440 = vld [vmem:[%s2 + $0xb0] sm:$0xff]
        %v441 = vld [vmem:[%s2 + $0xb8] sm:$0xff]
        %v442 = vld [vmem:[%s2 + $0xc0] sm:$0xff]
        %v443 = vld [vmem:[%s2 + $0xc8] sm:$0xff]
        %v444 = vld [vmem:[%s2 + $0xd0] sm:$0xff]
        %v445 = vld [vmem:[%s2 + $0xd8] sm:$0xff]
        %v446 = vld [vmem:[%s2 + $0xe0] sm:$0xff]
        %v447 = vld [vmem:[%s2 + $0xe8] sm:$0xff]
        %v448 = vld [vmem:[%s2 + $0xf0] sm:$0xff]
        %v449 = vld [vmem:[%s2 + $0xf8] sm:$0xff]
        %v450 = vld [vmem:[%s2 + $0x100] sm:$0xff]
        %v451 = vld [vmem:[%s2 + $0x108] sm:$0xff]
        %v452 = vld [vmem:[%s2 + $0x110] sm:$0xff]
        %v453 = vld [vmem:[%s2 + $0x118] sm:$0xff]
        %v454 = vld [vmem:[%s2 + $0x120] sm:$0xff]
        %v455 = vld [vmem:[%s2 + $0x128] sm:$0xff]
        %v456 = vld [vmem:[%s2 + $0x130] sm:$0xff]
        %v457 = vld [vmem:[%s2 + $0x138] sm:$0xff]
        %v458 = vld [vmem:[%s2 + $0x140] sm:$0xff]
        %v459 = vld [vmem:[%s2 + $0x148] sm:$0xff]
        %v460 = vld [vmem:[%s2 + $0x150] sm:$0xff]
        %v461 = vld [vmem:[%s2 + $0x158] sm:$0xff]
        %v462 = vld [vmem:[%s2 + $0x160] sm:$0xff]
        %v463 = vld [vmem:[%s2 + $0x168] sm:$0xff]
        %v464 = vld [vmem:[%s2 + $0x170] sm:$0xff]
        %v465 = vld [vmem:[%s2 + $0x178] sm:$0xff]
        %v466 = vld [vmem:[%s2 + $0x180] sm:$0xff]
        %v467 = vld [vmem:[%s2 + $0x188] sm:$0xff]
        %v468 = vld [vmem:[%s2 + $0x190] sm:$0xff]
        %v469 = vld [vmem:[%s2 + $0x198] sm:$0xff]
        %v470 = vld [vmem:[%s2 + $0x1a0] sm:$0xff]
        %v471 = vld [vmem:[%s2 + $0x1a8] sm:$0xff]
        %v472 = vld [vmem:[%s2 + $0x1b0] sm:$0xff]
        %v473 = vld [vmem:[%s2 + $0x1b8] sm:$0xff]
        %v474 = vld [vmem:[%s2 + $0x1c0] sm:$0xff]
        %v475 = vld [vmem:[%s2 + $0x1c8] sm:$0xff]
        %v476 = vld [vmem:[%s2 + $0x1d0] sm:$0xff]
        %v477 = vld [vmem:[%s2 + $0x1d8] sm:$0xff]
        %v478 = vld [vmem:[%s2 + $0x1e0] sm:$0xff]
        %v479 = vld [vmem:[%s2 + $0x1e8] sm:$0xff]
        %v480 = vld [vmem:[%s2 + $0x1f0] sm:$0xff]
        %v481 = vld [vmem:[%s2 + $0x1f8] sm:$0xff]
        %v482 = vld [vmem:[%s3] sm:$0xff]
        %v484 = vlaneseq
        %v485 = vshrl.u32 %v484, 7
        %v486 = vsub.s32 0, %v485
        %v487 = vrot.slane %v482, %v486
        %v488 = vlaneseq
        %v489 = vshrl.u32 %v488, 7
        %v490 = vsub.s32 1, %v489
        %v491 = vrot.slane %v482, %v490
        %v492 = vlaneseq
        %v493 = vshrl.u32 %v492, 7
        %v494 = vsub.s32 2, %v493
        %v495 = vrot.slane %v482, %v494
        %v496 = vlaneseq
        %v497 = vshrl.u32 %v496, 7
        %v498 = vsub.s32 3, %v497
        %v499 = vrot.slane %v482, %v498
        %v500 = vlaneseq
        %v501 = vshrl.u32 %v500, 7
        %v502 = vsub.s32 4, %v501
        %v503 = vrot.slane %v482, %v502
        %v504 = vlaneseq
        %v505 = vshrl.u32 %v504, 7
        %v506 = vsub.s32 5, %v505
        %v507 = vrot.slane %v482, %v506
        %v508 = vlaneseq
        %v509 = vshrl.u32 %v508, 7
        %v510 = vsub.s32 6, %v509
        %v511 = vrot.slane %v482, %v510
        %v512 = vlaneseq
        %v513 = vshrl.u32 %v512, 7
        %v514 = vsub.s32 7, %v513
        %v515 = vrot.slane %v482, %v514
        %v528 = vunpack.c.l.b16 %v414
        %v529 = vunpack.c.l.b16 %v415
        %v530 = vunpack.c.l.b16 %v416
        %v531 = vunpack.c.l.b16 %v417
        %v532 = vpack.c.b16 %v529, %v528
        %v533 = vpack.c.b16 %v531, %v530
        %v600 = vunpack.c.l.b16 %v418
        %v601 = vunpack.c.h.b16 %v418
        %v602 = vunpack.c.l.b16 %v419
        %v603 = vunpack.c.h.b16 %v419
        %v604 = vunpack.c.l.b16 %v420
        %v605 = vunpack.c.h.b16 %v420
        %v606 = vunpack.c.l.b16 %v421
        %v607 = vunpack.c.h.b16 %v421
        %v608 = vunpack.c.l.b16 %v422
        %v609 = vunpack.c.h.b16 %v422
        %v610 = vunpack.c.l.b16 %v423
        %v611 = vunpack.c.h.b16 %v423
        %v612 = vunpack.c.l.b16 %v424
        %v613 = vunpack.c.h.b16 %v424
        %v614 = vunpack.c.l.b16 %v425
        %v615 = vunpack.c.h.b16 %v425
        %v616 = vunpack.c.l.b16 %v426
        %v617 = vunpack.c.h.b16 %v426
        %v618 = vunpack.c.l.b16 %v427
        %v619 = vunpack.c.h.b16 %v427
        %v620 = vunpack.c.l.b16 %v428
        %v621 = vunpack.c.h.b16 %v428
        %v622 = vunpack.c.l.b16 %v429
        %v623 = vunpack.c.h.b16 %v429
        %v624 = vunpack.c.l.b16 %v430
        %v625 = vunpack.c.h.b16 %v430
        %v626 = vunpack.c.l.b16 %v431
        %v627 = vunpack.c.h.b16 %v431
        %v628 = vunpack.c.l.b16 %v432
        %v629 = vunpack.c.h.b16 %v432
        %v630 = vunpack.c.l.b16 %v433
        %v631 = vunpack.c.h.b16 %v433
        %v632 = vunpack.c.l.b16 %v434
        %v633 = vunpack.c.h.b16 %v434
        %v634 = vunpack.c.l.b16 %v435
        %v635 = vunpack.c.h.b16 %v435
        %v636 = vunpack.c.l.b16 %v436
        %v637 = vunpack.c.h.b16 %v436
        %v638 = vunpack.c.l.b16 %v437
        %v639 = vunpack.c.h.b16 %v437
        %v640 = vunpack.c.l.b16 %v438
        %v641 = vunpack.c.h.b16 %v438
        %v642 = vunpack.c.l.b16 %v439
        %v643 = vunpack.c.h.b16 %v439
        %v644 = vunpack.c.l.b16 %v440
        %v645 = vunpack.c.h.b16 %v440
        %v646 = vunpack.c.l.b16 %v441
        %v647 = vunpack.c.h.b16 %v441
        %v648 = vunpack.c.l.b16 %v442
        %v649 = vunpack.c.h.b16 %v442
        %v650 = vunpack.c.l.b16 %v443
        %v651 = vunpack.c.h.b16 %v443
        %v652 = vunpack.c.l.b16 %v444
        %v653 = vunpack.c.h.b16 %v444
        %v654 = vunpack.c.l.b16 %v445
        %v655 = vunpack.c.h.b16 %v445
        %v656 = vunpack.c.l.b16 %v446
        %v657 = vunpack.c.h.b16 %v446
        %v658 = vunpack.c.l.b16 %v447
        %v659 = vunpack.c.h.b16 %v447
        %v660 = vunpack.c.l.b16 %v448
        %v661 = vunpack.c.h.b16 %v448
        %v662 = vunpack.c.l.b16 %v449
        %v663 = vunpack.c.h.b16 %v449
        %v664 = vunpack.c.l.b16 %v450
        %v665 = vunpack.c.h.b16 %v450
        %v666 = vunpack.c.l.b16 %v451
        %v667 = vunpack.c.h.b16 %v451
        %v668 = vunpack.c.l.b16 %v452
        %v669 = vunpack.c.h.b16 %v452
        %v670 = vunpack.c.l.b16 %v453
        %v671 = vunpack.c.h.b16 %v453
        %v672 = vunpack.c.l.b16 %v454
        %v673 = vunpack.c.h.b16 %v454
        %v674 = vunpack.c.l.b16 %v455
        %v675 = vunpack.c.h.b16 %v455
        %v676 = vunpack.c.l.b16 %v456
        %v677 = vunpack.c.h.b16 %v456
        %v678 = vunpack.c.l.b16 %v457
        %v679 = vunpack.c.h.b16 %v457
        %v680 = vunpack.c.l.b16 %v458
        %v681 = vunpack.c.h.b16 %v458
        %v682 = vunpack.c.l.b16 %v459
        %v683 = vunpack.c.h.b16 %v459
        %v684 = vunpack.c.l.b16 %v460
        %v685 = vunpack.c.h.b16 %v460
        %v686 = vunpack.c.l.b16 %v461
        %v687 = vunpack.c.h.b16 %v461
        %v688 = vunpack.c.l.b16 %v462
        %v689 = vunpack.c.h.b16 %v462
        %v690 = vunpack.c.l.b16 %v463
        %v691 = vunpack.c.h.b16 %v463
        %v692 = vunpack.c.l.b16 %v464
        %v693 = vunpack.c.h.b16 %v464
        %v694 = vunpack.c.l.b16 %v465
        %v695 = vunpack.c.h.b16 %v465
        %v696 = vunpack.c.l.b16 %v466
        %v697 = vunpack.c.h.b16 %v466
        %v698 = vunpack.c.l.b16 %v467
        %v699 = vunpack.c.h.b16 %v467
        %v700 = vunpack.c.l.b16 %v468
        %v701 = vunpack.c.h.b16 %v468
        %v702 = vunpack.c.l.b16 %v469
        %v703 = vunpack.c.h.b16 %v469
        %v704 = vunpack.c.l.b16 %v470
        %v705 = vunpack.c.h.b16 %v470
        %v706 = vunpack.c.l.b16 %v471
        %v707 = vunpack.c.h.b16 %v471
        %v708 = vunpack.c.l.b16 %v472
        %v709 = vunpack.c.h.b16 %v472
        %v710 = vunpack.c.l.b16 %v473
        %v711 = vunpack.c.h.b16 %v473
        %v712 = vunpack.c.l.b16 %v474
        %v713 = vunpack.c.h.b16 %v474
        %v714 = vunpack.c.l.b16 %v475
        %v715 = vunpack.c.h.b16 %v475
        %v716 = vunpack.c.l.b16 %v476
        %v717 = vunpack.c.h.b16 %v476
        %v718 = vunpack.c.l.b16 %v477
        %v719 = vunpack.c.h.b16 %v477
        %v720 = vunpack.c.l.b16 %v478
        %v721 = vunpack.c.h.b16 %v478
        %v722 = vunpack.c.l.b16 %v479
        %v723 = vunpack.c.h.b16 %v479
        %v724 = vunpack.c.l.b16 %v480
        %v725 = vunpack.c.h.b16 %v480
        %v726 = vunpack.c.l.b16 %v481
        %v727 = vunpack.c.h.b16 %v481
        %v728 = vpack.c.b16 %v608, %v600
        %v729 = vpack.c.b16 %v609, %v601
        %v730 = vpack.c.b16 %v610, %v602
        %v731 = vpack.c.b16 %v611, %v603
        %v732 = vpack.c.b16 %v612, %v604
        %v733 = vpack.c.b16 %v613, %v605
        %v734 = vpack.c.b16 %v614, %v606
        %v735 = vpack.c.b16 %v615, %v607
        %v736 = vpack.c.b16 %v624, %v616
        %v737 = vpack.c.b16 %v625, %v617
        %v738 = vpack.c.b16 %v626, %v618
        %v739 = vpack.c.b16 %v627, %v619
        %v740 = vpack.c.b16 %v628, %v620
        %v741 = vpack.c.b16 %v629, %v621
        %v742 = vpack.c.b16 %v630, %v622
        %v743 = vpack.c.b16 %v631, %v623
        %v744 = vpack.c.b16 %v640, %v632
        %v745 = vpack.c.b16 %v641, %v633
        %v746 = vpack.c.b16 %v642, %v634
        %v747 = vpack.c.b16 %v643, %v635
        %v748 = vpack.c.b16 %v644, %v636
        %v749 = vpack.c.b16 %v645, %v637
        %v750 = vpack.c.b16 %v646, %v638
        %v751 = vpack.c.b16 %v647, %v639
        %v752 = vpack.c.b16 %v656, %v648
        %v753 = vpack.c.b16 %v657, %v649
        %v754 = vpack.c.b16 %v658, %v650
        %v755 = vpack.c.b16 %v659, %v651
        %v756 = vpack.c.b16 %v660, %v652
        %v757 = vpack.c.b16 %v661, %v653
        %v758 = vpack.c.b16 %v662, %v654
        %v759 = vpack.c.b16 %v663, %v655
        %v760 = vpack.c.b16 %v672, %v664
        %v761 = vpack.c.b16 %v673, %v665
        %v762 = vpack.c.b16 %v674, %v666
        %v763 = vpack.c.b16 %v675, %v667
        %v764 = vpack.c.b16 %v676, %v668
        %v765 = vpack.c.b16 %v677, %v669
        %v766 = vpack.c.b16 %v678, %v670
        %v767 = vpack.c.b16 %v679, %v671
        %v768 = vpack.c.b16 %v688, %v680
        %v769 = vpack.c.b16 %v689, %v681
        %v770 = vpack.c.b16 %v690, %v682
        %v771 = vpack.c.b16 %v691, %v683
        %v772 = vpack.c.b16 %v692, %v684
        %v773 = vpack.c.b16 %v693, %v685
        %v774 = vpack.c.b16 %v694, %v686
        %v775 = vpack.c.b16 %v695, %v687
        %v776 = vpack.c.b16 %v704, %v696
        %v777 = vpack.c.b16 %v705, %v697
        %v778 = vpack.c.b16 %v706, %v698
        %v779 = vpack.c.b16 %v707, %v699
        %v780 = vpack.c.b16 %v708, %v700
        %v781 = vpack.c.b16 %v709, %v701
        %v782 = vpack.c.b16 %v710, %v702
        %v783 = vpack.c.b16 %v711, %v703
        %v784 = vpack.c.b16 %v720, %v712
        %v785 = vpack.c.b16 %v721, %v713
        %v786 = vpack.c.b16 %v722, %v714
        %v787 = vpack.c.b16 %v723, %v715
        %v788 = vpack.c.b16 %v724, %v716
        %v789 = vpack.c.b16 %v725, %v717
        %v790 = vpack.c.b16 %v726, %v718
        %v791 = vpack.c.b16 %v727, %v719
        %856 = vmatprep.subr.bf16.mxu0 %v729
        %857 = vmatpush1.bf16.msra.mxu0 %v728
        %858 = vmatprep.subr.bf16.mxu0 %v737
        %859 = vmatpush1.bf16.msra.mxu0 %v736
        %860 = vmatprep.subr.bf16.mxu0 %v745
        %861 = vmatpush1.bf16.msra.mxu0 %v744
        %862 = vmatprep.subr.bf16.mxu0 %v753
        %863 = vmatpush1.bf16.msra.mxu0 %v752
        %864 = vmatprep.subr.bf16.mxu0 %v761
        %865 = vmatpush1.bf16.msra.mxu0 %v760
        %866 = vmatprep.subr.bf16.mxu0 %v769
        %867 = vmatpush1.bf16.msra.mxu0 %v768
        %868 = vmatprep.subr.bf16.mxu0 %v777
        %869 = vmatpush1.bf16.msra.mxu0 %v776
        %870 = vmatprep.subr.bf16.mxu0 %v785
        %871 = vmatpush1.bf16.msra.mxu0 %v784
        %872 = vmatprep.subr.bf16.mxu0 0
        %873 = vmatpush1.bf16.msra.mxu0 0
        %874 = vmatprep.subr.bf16.mxu0 0
        %875 = vmatpush1.bf16.msra.mxu0 0
        %876 = vmatprep.subr.bf16.mxu0 0
        %877 = vmatpush1.bf16.msra.mxu0 0
        %878 = vmatprep.subr.bf16.mxu0 0
        %879 = vmatpush1.bf16.msra.mxu0 0
        %880 = vmatprep.subr.bf16.mxu0 0
        %881 = vmatpush1.bf16.msra.mxu0 0
        %882 = vmatprep.subr.bf16.mxu0 0
        %883 = vmatpush1.bf16.msra.mxu0 0
        %884 = vmatprep.subr.bf16.mxu0 0
        %885 = vmatpush1.bf16.msra.mxu0 0
        %886 = vmatprep.subr.bf16.mxu0 0
        %887 = vmatpush1.bf16.msra.mxu0 0
        %888 = vmatprep.mubr.bf16.mxu0 0
        %889 = vmatmul.mubr.bf16.gmra.mrb[0].mxu0 %v532
        %v890 = vpop.f32.mrb[0].mxu0
        %v891 = vadd.f32 %v487, %v890
        %v892 = vpop.f32.mrb[0].mxu0
        %v893 = vadd.f32 %v491, %v892
        %v894 = vpop.f32.mrb[0].mxu0
        %v895 = vadd.f32 %v487, %v894
        %v896 = vpop.f32.mrb[0].mxu0
        %v897 = vadd.f32 %v491, %v896
        %898 = vmatprep.mubr.bf16.mxu0 0
        %899 = vmatmul.mubr.bf16.gmra.mrb[0].mxu0 %v533
        %v900 = vpop.f32.mrb[0].mxu0
        %v901 = vadd.f32 %v487, %v900
        %v902 = vpop.f32.mrb[0].mxu0
        %v903 = vadd.f32 %v491, %v902
        %v904 = vpop.f32.mrb[0].mxu0
        %v905 = vadd.f32 %v487, %v904
        %v906 = vpop.f32.mrb[0].mxu0
        %v907 = vadd.f32 %v491, %v906
        %908 = vdwg.mxu0
        %909 = vmatprep.subr.bf16.mxu0 %v731
        %910 = vmatpush1.bf16.msra.mxu0 %v730
        %911 = vmatprep.subr.bf16.mxu0 %v739
        %912 = vmatpush1.bf16.msra.mxu0 %v738
        %913 = vmatprep.subr.bf16.mxu0 %v747
        %914 = vmatpush1.bf16.msra.mxu0 %v746
        %915 = vmatprep.subr.bf16.mxu0 %v755
        %916 = vmatpush1.bf16.msra.mxu0 %v754
        %917 = vmatprep.subr.bf16.mxu0 %v763
        %918 = vmatpush1.bf16.msra.mxu0 %v762
        %919 = vmatprep.subr.bf16.mxu0 %v771
        %920 = vmatpush1.bf16.msra.mxu0 %v770
        %921 = vmatprep.subr.bf16.mxu0 %v779
        %922 = vmatpush1.bf16.msra.mxu0 %v778
        %923 = vmatprep.subr.bf16.mxu0 %v787
        %924 = vmatpush1.bf16.msra.mxu0 %v786
        %925 = vmatprep.subr.bf16.mxu0 0
        %926 = vmatpush1.bf16.msra.mxu0 0
        %927 = vmatprep.subr.bf16.mxu0 0
        %928 = vmatpush1.bf16.msra.mxu0 0
        %929 = vmatprep.subr.bf16.mxu0 0
        %930 = vmatpush1.bf16.msra.mxu0 0
        %931 = vmatprep.subr.bf16.mxu0 0
        %932 = vmatpush1.bf16.msra.mxu0 0
        %933 = vmatprep.subr.bf16.mxu0 0
        %934 = vmatpush1.bf16.msra.mxu0 0
        %935 = vmatprep.subr.bf16.mxu0 0
        %936 = vmatpush1.bf16.msra.mxu0 0
        %937 = vmatprep.subr.bf16.mxu0 0
        %938 = vmatpush1.bf16.msra.mxu0 0
        %939 = vmatprep.subr.bf16.mxu0 0
        %940 = vmatpush1.bf16.msra.mxu0 0
        %941 = vmatprep.mubr.bf16.mxu0 0
        %942 = vmatmul.mubr.bf16.gmra.mrb[0].mxu0 %v532
        %v943 = vpop.f32.mrb[0].mxu0
        %v944 = vadd.f32 %v495, %v943
        %v945 = vpop.f32.mrb[0].mxu0
        %v946 = vadd.f32 %v499, %v945
        %v947 = vpop.f32.mrb[0].mxu0
        %v948 = vadd.f32 %v495, %v947
        %v949 = vpop.f32.mrb[0].mxu0
        %v950 = vadd.f32 %v499, %v949
        %951 = vmatprep.mubr.bf16.mxu0 0
        %952 = vmatmul.mubr.bf16.gmra.mrb[0].mxu0 %v533
        %v953 = vpop.f32.mrb[0].mxu0
        %v954 = vadd.f32 %v495, %v953
        %v955 = vpop.f32.mrb[0].mxu0
        %v956 = vadd.f32 %v499, %v955
        %v957 = vpop.f32.mrb[0].mxu0
        %v958 = vadd.f32 %v495, %v957
        %v959 = vpop.f32.mrb[0].mxu0
        %v960 = vadd.f32 %v499, %v959
        %961 = vdwg.mxu0
        %962 = vmatprep.subr.bf16.mxu0 %v733
        %963 = vmatpush1.bf16.msra.mxu0 %v732
        %964 = vmatprep.subr.bf16.mxu0 %v741
        %965 = vmatpush1.bf16.msra.mxu0 %v740
        %966 = vmatprep.subr.bf16.mxu0 %v749
        %967 = vmatpush1.bf16.msra.mxu0 %v748
        %968 = vmatprep.subr.bf16.mxu0 %v757
        %969 = vmatpush1.bf16.msra.mxu0 %v756
        %970 = vmatprep.subr.bf16.mxu0 %v765
        %971 = vmatpush1.bf16.msra.mxu0 %v764
        %972 = vmatprep.subr.bf16.mxu0 %v773
        %973 = vmatpush1.bf16.msra.mxu0 %v772
        %974 = vmatprep.subr.bf16.mxu0 %v781
        %975 = vmatpush1.bf16.msra.mxu0 %v780
        %976 = vmatprep.subr.bf16.mxu0 %v789
        %977 = vmatpush1.bf16.msra.mxu0 %v788
        %978 = vmatprep.subr.bf16.mxu0 0
        %979 = vmatpush1.bf16.msra.mxu0 0
        %980 = vmatprep.subr.bf16.mxu0 0
        %981 = vmatpush1.bf16.msra.mxu0 0
        %982 = vmatprep.subr.bf16.mxu0 0
        %983 = vmatpush1.bf16.msra.mxu0 0
        %984 = vmatprep.subr.bf16.mxu0 0
        %985 = vmatpush1.bf16.msra.mxu0 0
        %986 = vmatprep.subr.bf16.mxu0 0
        %987 = vmatpush1.bf16.msra.mxu0 0
        %988 = vmatprep.subr.bf16.mxu0 0
        %989 = vmatpush1.bf16.msra.mxu0 0
        %990 = vmatprep.subr.bf16.mxu0 0
        %991 = vmatpush1.bf16.msra.mxu0 0
        %992 = vmatprep.subr.bf16.mxu0 0
        %993 = vmatpush1.bf16.msra.mxu0 0
        %994 = vmatprep.mubr.bf16.mxu0 0
        %995 = vmatmul.mubr.bf16.gmra.mrb[0].mxu0 %v532
        %v996 = vpop.f32.mrb[0].mxu0
        %v997 = vadd.f32 %v503, %v996
        %v998 = vpop.f32.mrb[0].mxu0
        %v999 = vadd.f32 %v507, %v998
        %v1000 = vpop.f32.mrb[0].mxu0
        %v1001 = vadd.f32 %v503, %v1000
        %v1002 = vpop.f32.mrb[0].mxu0
        %v1003 = vadd.f32 %v507, %v1002
        %1004 = vmatprep.mubr.bf16.mxu0 0
        %1005 = vmatmul.mubr.bf16.gmra.mrb[0].mxu0 %v533
        %v1006 = vpop.f32.mrb[0].mxu0
        %v1007 = vadd.f32 %v503, %v1006
        %v1008 = vpop.f32.mrb[0].mxu0
        %v1009 = vadd.f32 %v507, %v1008
        %v1010 = vpop.f32.mrb[0].mxu0
        %v1011 = vadd.f32 %v503, %v1010
        %v1012 = vpop.f32.mrb[0].mxu0
        %v1013 = vadd.f32 %v507, %v1012
        %1014 = vdwg.mxu0
        %1015 = vmatprep.subr.bf16.mxu0 %v735
        %1016 = vmatpush1.bf16.msra.mxu0 %v734
        %1017 = vmatprep.subr.bf16.mxu0 %v743
        %1018 = vmatpush1.bf16.msra.mxu0 %v742
        %1019 = vmatprep.subr.bf16.mxu0 %v751
        %1020 = vmatpush1.bf16.msra.mxu0 %v750
        %1021 = vmatprep.subr.bf16.mxu0 %v759
        %1022 = vmatpush1.bf16.msra.mxu0 %v758
        %1023 = vmatprep.subr.bf16.mxu0 %v767
        %1024 = vmatpush1.bf16.msra.mxu0 %v766
        %1025 = vmatprep.subr.bf16.mxu0 %v775
        %1026 = vmatpush1.bf16.msra.mxu0 %v774
        %1027 = vmatprep.subr.bf16.mxu0 %v783
        %1028 = vmatpush1.bf16.msra.mxu0 %v782
        %1029 = vmatprep.subr.bf16.mxu0 %v791
        %1030 = vmatpush1.bf16.msra.mxu0 %v790
        %1031 = vmatprep.subr.bf16.mxu0 0
        %1032 = vmatpush1.bf16.msra.mxu0 0
        %1033 = vmatprep.subr.bf16.mxu0 0
        %1034 = vmatpush1.bf16.msra.mxu0 0
        %1035 = vmatprep.subr.bf16.mxu0 0
        %1036 = vmatpush1.bf16.msra.mxu0 0
        %1037 = vmatprep.subr.bf16.mxu0 0
        %1038 = vmatpush1.bf16.msra.mxu0 0
        %1039 = vmatprep.subr.bf16.mxu0 0
        %1040 = vmatpush1.bf16.msra.mxu0 0
        %1041 = vmatprep.subr.bf16.mxu0 0
        %1042 = vmatpush1.bf16.msra.mxu0 0
        %1043 = vmatprep.subr.bf16.mxu0 0
        %1044 = vmatpush1.bf16.msra.mxu0 0
        %1045 = vmatprep.subr.bf16.mxu0 0
        %1046 = vmatpush1.bf16.msra.mxu0 0
        %1047 = vmatprep.mubr.bf16.mxu0 0
        %1048 = vmatmul.mubr.bf16.gmra.mrb[0].mxu0 %v532
        %v1049 = vpop.f32.mrb[0].mxu0
        %v1050 = vadd.f32 %v511, %v1049
        %v1051 = vpop.f32.mrb[0].mxu0
        %v1052 = vadd.f32 %v515, %v1051
        %v1053 = vpop.f32.mrb[0].mxu0
        %v1054 = vadd.f32 %v511, %v1053
        %v1055 = vpop.f32.mrb[0].mxu0
        %v1056 = vadd.f32 %v515, %v1055
        %1057 = vmatprep.mubr.bf16.mxu0 0
        %1058 = vmatmul.mubr.bf16.gmra.mrb[0].mxu0 %v533
        %v1059 = vpop.f32.mrb[0].mxu0
        %v1060 = vadd.f32 %v511, %v1059
        %v1061 = vpop.f32.mrb[0].mxu0
        %v1062 = vadd.f32 %v515, %v1061
        %v1063 = vpop.f32.mrb[0].mxu0
        %v1064 = vadd.f32 %v511, %v1063
        %v1065 = vpop.f32.mrb[0].mxu0
        %v1066 = vadd.f32 %v515, %v1065
        %1067 = vdwg.mxu0
        %v1068 = vmax.f32 %v891, 0.0
        %v1069 = vmax.f32 %v893, 0.0
        %v1070 = vmax.f32 %v944, 0.0
        %v1071 = vmax.f32 %v946, 0.0
        %v1072 = vmax.f32 %v997, 0.0
        %v1073 = vmax.f32 %v999, 0.0
        %v1074 = vmax.f32 %v1050, 0.0
        %v1075 = vmax.f32 %v1052, 0.0
        %v1076 = vmax.f32 %v895, 0.0
        %v1077 = vmax.f32 %v897, 0.0
        %v1078 = vmax.f32 %v948, 0.0
        %v1079 = vmax.f32 %v950, 0.0
        %v1080 = vmax.f32 %v1001, 0.0
        %v1081 = vmax.f32 %v1003, 0.0
        %v1082 = vmax.f32 %v1054, 0.0
        %v1083 = vmax.f32 %v1056, 0.0
        %v1084 = vmax.f32 %v901, 0.0
        %v1085 = vmax.f32 %v903, 0.0
        %v1086 = vmax.f32 %v954, 0.0
        %v1087 = vmax.f32 %v956, 0.0
        %v1088 = vmax.f32 %v1007, 0.0
        %v1089 = vmax.f32 %v1009, 0.0
        %v1090 = vmax.f32 %v1060, 0.0
        %v1091 = vmax.f32 %v1062, 0.0
        %v1092 = vmax.f32 %v905, 0.0
        %v1093 = vmax.f32 %v907, 0.0
        %v1094 = vmax.f32 %v958, 0.0
        %v1095 = vmax.f32 %v960, 0.0
        %v1096 = vmax.f32 %v1011, 0.0
        %v1097 = vmax.f32 %v1013, 0.0
        %v1098 = vmax.f32 %v1064, 0.0
        %v1099 = vmax.f32 %v1066, 0.0
        %v1100 = vld [vmem:[#allocation2] sm:$0xff]
        %v1101 = vld [vmem:[#allocation2 + $0x8] sm:$0xff]
        %v1102 = vld [vmem:[#allocation2 + $0x10] sm:$0xff]
        %v1103 = vld [vmem:[#allocation2 + $0x18] sm:$0xff]
        %v1104 = vld [vmem:[#allocation2 + $0x20] sm:$0xff]
        %v1105 = vld [vmem:[#allocation2 + $0x28] sm:$0xff]
        %v1106 = vld [vmem:[#allocation2 + $0x30] sm:$0xff]
        %v1107 = vld [vmem:[#allocation2 + $0x38] sm:$0xff]
        %v1108 = vld [vmem:[%s399] sm:$0xff]
        %v1109 = vld [vmem:[%s399 + $0x8] sm:$0xff]
        %v1110 = vld [vmem:[%s399 + $0x10] sm:$0xff]
        %v1111 = vld [vmem:[%s399 + $0x18] sm:$0xff]
        %1112 = vxpose.xlu0.b32.start [1/16] %v1108, 128
        %1113 = vxpose.xlu0.b32.cont [2/16] %v1109, 128
        %1114 = vxpose.xlu0.b32.cont [3/16] %v1110, 128
        %1115 = vxpose.xlu0.b32.cont [4/16] %v1111, 128
        %1116 = vxpose.xlu0.b32.cont [5/16] 0.0, 128
        %1117 = vxpose.xlu0.b32.cont [6/16] 0.0, 128
        %1118 = vxpose.xlu0.b32.cont [7/16] 0.0, 128
        %1119 = vxpose.xlu0.b32.cont [8/16] 0.0, 128
        %1120 = vxpose.xlu0.b32.cont [9/16] 0.0, 128
        %1121 = vxpose.xlu0.b32.cont [10/16] 0.0, 128
        %1122 = vxpose.xlu0.b32.cont [11/16] 0.0, 128
        %1123 = vxpose.xlu0.b32.cont [12/16] 0.0, 128
        %1124 = vxpose.xlu0.b32.cont [13/16] 0.0, 128
        %1125 = vxpose.xlu0.b32.cont [14/16] 0.0, 128
        %1126 = vxpose.xlu0.b32.cont [15/16] 0.0, 128
        %1127 = vxpose.xlu0.b32.end [16/16] 0.0, 128
        %v1128 = vpop.trf.xlu0
        %v1129 = vpop.trf.xlu0
        %v1130 = vpop.trf.xlu0
        %v1131 = vpop.trf.xlu0
        %v1132 = vpop.trf.xlu0
        %v1133 = vpop.trf.xlu0
        %v1134 = vpop.trf.xlu0
        %v1135 = vpop.trf.xlu0
        %v1136 = vpop.trf.xlu0
        %v1137 = vpop.trf.xlu0
        %v1138 = vpop.trf.xlu0
        %v1139 = vpop.trf.xlu0
        %v1140 = vpop.trf.xlu0
        %v1141 = vpop.trf.xlu0
        %v1142 = vpop.trf.xlu0
        %v1143 = vpop.trf.xlu0
        %vm1144 = vcmask 261120
        %v1146 = vsel %vm1144, %v1128, 0
        %1148 = vmatprep.subr.mxu0 %v1069
        %1149 = vmatpush1.msra.mxu0 %v1068
        %1150 = vmatprep.subr.mxu0 %v1077
        %1151 = vmatpush1.msra.mxu0 %v1076
        %1152 = vmatprep.subr.mxu0 %v1085
        %1153 = vmatpush1.msra.mxu0 %v1084
        %1154 = vmatprep.subr.mxu0 %v1093
        %1155 = vmatpush1.msra.mxu0 %v1092
        %1156 = vmatprep.subr.mxu0 0.0
        %1157 = vmatpush1.msra.mxu0 0.0
        %1158 = vmatprep.subr.mxu0 0.0
        %1159 = vmatpush1.msra.mxu0 0.0
        %1160 = vmatprep.subr.mxu0 0.0
        %1161 = vmatpush1.msra.mxu0 0.0
        %1162 = vmatprep.subr.mxu0 0.0
        %1163 = vmatpush1.msra.mxu0 0.0
        %1164 = vmatprep.subr.mxu0 0.0
        %1165 = vmatpush1.msra.mxu0 0.0
        %1166 = vmatprep.subr.mxu0 0.0
        %1167 = vmatpush1.msra.mxu0 0.0
        %1168 = vmatprep.subr.mxu0 0.0
        %1169 = vmatpush1.msra.mxu0 0.0
        %1170 = vmatprep.subr.mxu0 0.0
        %1171 = vmatpush1.msra.mxu0 0.0
        %1172 = vmatprep.subr.mxu0 0.0
        %1173 = vmatpush1.msra.mxu0 0.0
        %1174 = vmatprep.subr.mxu0 0.0
        %1175 = vmatpush1.msra.mxu0 0.0
        %1176 = vmatprep.subr.mxu0 0.0
        %1177 = vmatpush1.msra.mxu0 0.0
        %1178 = vmatprep.subr.mxu0 0.0
        %1179 = vmatpush1.msra.mxu0 0.0
        %1180 = vmatprep.subr.mxu0 0.0
        %1181 = vmatpush1.msra.mxu0 0.0
        %1182 = vmatprep.subr.mxu0 0.0
        %1183 = vmatpush1.msra.mxu0 0.0
        %1184 = vmatprep.subr.mxu0 0.0
        %1185 = vmatpush1.msra.mxu0 0.0
        %1186 = vmatprep.subr.mxu0 0.0
        %1187 = vmatpush1.msra.mxu0 0.0
        %1188 = vmatprep.subr.mxu0 0.0
        %1189 = vmatpush1.msra.mxu0 0.0
        %1190 = vmatprep.subr.mxu0 0.0
        %1191 = vmatpush1.msra.mxu0 0.0
        %1192 = vmatprep.subr.mxu0 0.0
        %1193 = vmatpush1.msra.mxu0 0.0
        %1194 = vmatprep.subr.mxu0 0.0
        %1195 = vmatpush1.msra.mxu0 0.0
        %1196 = vmatprep.subr.mxu0 0.0
        %1197 = vmatpush1.msra.mxu0 0.0
        %1198 = vmatprep.subr.mxu0 0.0
        %1199 = vmatpush1.msra.mxu0 0.0
        %1200 = vmatprep.subr.mxu0 0.0
        %1201 = vmatpush1.msra.mxu0 0.0
        %1202 = vmatprep.subr.mxu0 0.0
        %1203 = vmatpush1.msra.mxu0 0.0
        %1204 = vmatprep.subr.mxu0 0.0
        %1205 = vmatpush1.msra.mxu0 0.0
        %1206 = vmatprep.subr.mxu0 0.0
        %1207 = vmatpush1.msra.mxu0 0.0
        %1208 = vmatprep.subr.mxu0 0.0
        %1209 = vmatpush1.msra.mxu0 0.0
        %1210 = vmatprep.subr.mxu0 0.0
        %1211 = vmatpush1.msra.mxu0 0.0
        %1212 = vmatprep.mubr.f32.mxu0 0.0
        %1213 = vmatmul.mubr.f32.gmra.mrb[0].mxu0 %v1146
        %v1214 = vpop.f32.mrb[0].mxu0
        %v1215 = vadd.f32 0.0, %v1214
        %v1216 = vpop.f32.mrb[0].mxu0
        %v1217 = vadd.f32 0.0, %v1216
        %1218 = vdwg.mxu0
        %1219 = vmatprep.subr.mxu0 %v1071
        %1220 = vmatpush1.msra.mxu0 %v1070
        %1221 = vmatprep.subr.mxu0 %v1079
        %1222 = vmatpush1.msra.mxu0 %v1078
        %1223 = vmatprep.subr.mxu0 %v1087
        %1224 = vmatpush1.msra.mxu0 %v1086
        %1225 = vmatprep.subr.mxu0 %v1095
        %1226 = vmatpush1.msra.mxu0 %v1094
        %1227 = vmatprep.subr.mxu0 0.0
        %1228 = vmatpush1.msra.mxu0 0.0
        %1229 = vmatprep.subr.mxu0 0.0
        %1230 = vmatpush1.msra.mxu0 0.0
        %1231 = vmatprep.subr.mxu0 0.0
        %1232 = vmatpush1.msra.mxu0 0.0
        %1233 = vmatprep.subr.mxu0 0.0
        %1234 = vmatpush1.msra.mxu0 0.0
        %1235 = vmatprep.subr.mxu0 0.0
        %1236 = vmatpush1.msra.mxu0 0.0
        %1237 = vmatprep.subr.mxu0 0.0
        %1238 = vmatpush1.msra.mxu0 0.0
        %1239 = vmatprep.subr.mxu0 0.0
        %1240 = vmatpush1.msra.mxu0 0.0
        %1241 = vmatprep.subr.mxu0 0.0
        %1242 = vmatpush1.msra.mxu0 0.0
        %1243 = vmatprep.subr.mxu0 0.0
        %1244 = vmatpush1.msra.mxu0 0.0
        %1245 = vmatprep.subr.mxu0 0.0
        %1246 = vmatpush1.msra.mxu0 0.0
        %1247 = vmatprep.subr.mxu0 0.0
        %1248 = vmatpush1.msra.mxu0 0.0
        %1249 = vmatprep.subr.mxu0 0.0
        %1250 = vmatpush1.msra.mxu0 0.0
        %1251 = vmatprep.subr.mxu0 0.0
        %1252 = vmatpush1.msra.mxu0 0.0
        %1253 = vmatprep.subr.mxu0 0.0
        %1254 = vmatpush1.msra.mxu0 0.0
        %1255 = vmatprep.subr.mxu0 0.0
        %1256 = vmatpush1.msra.mxu0 0.0
        %1257 = vmatprep.subr.mxu0 0.0
        %1258 = vmatpush1.msra.mxu0 0.0
        %1259 = vmatprep.subr.mxu0 0.0
        %1260 = vmatpush1.msra.mxu0 0.0
        %1261 = vmatprep.subr.mxu0 0.0
        %1262 = vmatpush1.msra.mxu0 0.0
        %1263 = vmatprep.subr.mxu0 0.0
        %1264 = vmatpush1.msra.mxu0 0.0
        %1265 = vmatprep.subr.mxu0 0.0
        %1266 = vmatpush1.msra.mxu0 0.0
        %1267 = vmatprep.subr.mxu0 0.0
        %1268 = vmatpush1.msra.mxu0 0.0
        %1269 = vmatprep.subr.mxu0 0.0
        %1270 = vmatpush1.msra.mxu0 0.0
        %1271 = vmatprep.subr.mxu0 0.0
        %1272 = vmatpush1.msra.mxu0 0.0
        %1273 = vmatprep.subr.mxu0 0.0
        %1274 = vmatpush1.msra.mxu0 0.0
        %1275 = vmatprep.subr.mxu0 0.0
        %1276 = vmatpush1.msra.mxu0 0.0
        %1277 = vmatprep.subr.mxu0 0.0
        %1278 = vmatpush1.msra.mxu0 0.0
        %1279 = vmatprep.subr.mxu0 0.0
        %1280 = vmatpush1.msra.mxu0 0.0
        %1281 = vmatprep.subr.mxu0 0.0
        %1282 = vmatpush1.msra.mxu0 0.0
        %1283 = vmatprep.mubr.f32.mxu0 0.0
        %1284 = vmatmul.mubr.f32.gmra.mrb[0].mxu0 %v1146
        %v1285 = vpop.f32.mrb[0].mxu0
        %v1286 = vadd.f32 0.0, %v1285
        %v1287 = vpop.f32.mrb[0].mxu0
        %v1288 = vadd.f32 0.0, %v1287
        %1289 = vdwg.mxu0
        %1290 = vmatprep.subr.mxu0 %v1073
        %1291 = vmatpush1.msra.mxu0 %v1072
        %1292 = vmatprep.subr.mxu0 %v1081
        %1293 = vmatpush1.msra.mxu0 %v1080
        %1294 = vmatprep.subr.mxu0 %v1089
        %1295 = vmatpush1.msra.mxu0 %v1088
        %1296 = vmatprep.subr.mxu0 %v1097
        %1297 = vmatpush1.msra.mxu0 %v1096
        %1298 = vmatprep.subr.mxu0 0.0
        %1299 = vmatpush1.msra.mxu0 0.0
        %1300 = vmatprep.subr.mxu0 0.0
        %1301 = vmatpush1.msra.mxu0 0.0
        %1302 = vmatprep.subr.mxu0 0.0
        %1303 = vmatpush1.msra.mxu0 0.0
        %1304 = vmatprep.subr.mxu0 0.0
        %1305 = vmatpush1.msra.mxu0 0.0
        %1306 = vmatprep.subr.mxu0 0.0
        %1307 = vmatpush1.msra.mxu0 0.0
        %1308 = vmatprep.subr.mxu0 0.0
        %1309 = vmatpush1.msra.mxu0 0.0
        %1310 = vmatprep.subr.mxu0 0.0
        %1311 = vmatpush1.msra.mxu0 0.0
        %1312 = vmatprep.subr.mxu0 0.0
        %1313 = vmatpush1.msra.mxu0 0.0
        %1314 = vmatprep.subr.mxu0 0.0
        %1315 = vmatpush1.msra.mxu0 0.0
        %1316 = vmatprep.subr.mxu0 0.0
        %1317 = vmatpush1.msra.mxu0 0.0
        %1318 = vmatprep.subr.mxu0 0.0
        %1319 = vmatpush1.msra.mxu0 0.0
        %1320 = vmatprep.subr.mxu0 0.0
        %1321 = vmatpush1.msra.mxu0 0.0
        %1322 = vmatprep.subr.mxu0 0.0
        %1323 = vmatpush1.msra.mxu0 0.0
        %1324 = vmatprep.subr.mxu0 0.0
        %1325 = vmatpush1.msra.mxu0 0.0
        %1326 = vmatprep.subr.mxu0 0.0
        %1327 = vmatpush1.msra.mxu0 0.0
        %1328 = vmatprep.subr.mxu0 0.0
        %1329 = vmatpush1.msra.mxu0 0.0
        %1330 = vmatprep.subr.mxu0 0.0
        %1331 = vmatpush1.msra.mxu0 0.0
        %1332 = vmatprep.subr.mxu0 0.0
        %1333 = vmatpush1.msra.mxu0 0.0
        %1334 = vmatprep.subr.mxu0 0.0
        %1335 = vmatpush1.msra.mxu0 0.0
        %1336 = vmatprep.subr.mxu0 0.0
        %1337 = vmatpush1.msra.mxu0 0.0
        %1338 = vmatprep.subr.mxu0 0.0
        %1339 = vmatpush1.msra.mxu0 0.0
        %1340 = vmatprep.subr.mxu0 0.0
        %1341 = vmatpush1.msra.mxu0 0.0
        %1342 = vmatprep.subr.mxu0 0.0
        %1343 = vmatpush1.msra.mxu0 0.0
        %1344 = vmatprep.subr.mxu0 0.0
        %1345 = vmatpush1.msra.mxu0 0.0
        %1346 = vmatprep.subr.mxu0 0.0
        %1347 = vmatpush1.msra.mxu0 0.0
        %1348 = vmatprep.subr.mxu0 0.0
        %1349 = vmatpush1.msra.mxu0 0.0
        %1350 = vmatprep.subr.mxu0 0.0
        %1351 = vmatpush1.msra.mxu0 0.0
        %1352 = vmatprep.subr.mxu0 0.0
        %1353 = vmatpush1.msra.mxu0 0.0
        %1354 = vmatprep.mubr.f32.mxu0 0.0
        %1355 = vmatmul.mubr.f32.gmra.mrb[0].mxu0 %v1146
        %v1356 = vpop.f32.mrb[0].mxu0
        %v1357 = vadd.f32 0.0, %v1356
        %v1358 = vpop.f32.mrb[0].mxu0
        %v1359 = vadd.f32 0.0, %v1358
        %1360 = vdwg.mxu0
        %1361 = vmatprep.subr.mxu0 %v1075
        %1362 = vmatpush1.msra.mxu0 %v1074
        %1363 = vmatprep.subr.mxu0 %v1083
        %1364 = vmatpush1.msra.mxu0 %v1082
        %1365 = vmatprep.subr.mxu0 %v1091
        %1366 = vmatpush1.msra.mxu0 %v1090
        %1367 = vmatprep.subr.mxu0 %v1099
        %1368 = vmatpush1.msra.mxu0 %v1098
        %1369 = vmatprep.subr.mxu0 0.0
        %1370 = vmatpush1.msra.mxu0 0.0
        %1371 = vmatprep.subr.mxu0 0.0
        %1372 = vmatpush1.msra.mxu0 0.0
        %1373 = vmatprep.subr.mxu0 0.0
        %1374 = vmatpush1.msra.mxu0 0.0
        %1375 = vmatprep.subr.mxu0 0.0
        %1376 = vmatpush1.msra.mxu0 0.0
        %1377 = vmatprep.subr.mxu0 0.0
        %1378 = vmatpush1.msra.mxu0 0.0
        %1379 = vmatprep.subr.mxu0 0.0
        %1380 = vmatpush1.msra.mxu0 0.0
        %1381 = vmatprep.subr.mxu0 0.0
        %1382 = vmatpush1.msra.mxu0 0.0
        %1383 = vmatprep.subr.mxu0 0.0
        %1384 = vmatpush1.msra.mxu0 0.0
        %1385 = vmatprep.subr.mxu0 0.0
        %1386 = vmatpush1.msra.mxu0 0.0
        %1387 = vmatprep.subr.mxu0 0.0
        %1388 = vmatpush1.msra.mxu0 0.0
        %1389 = vmatprep.subr.mxu0 0.0
        %1390 = vmatpush1.msra.mxu0 0.0
        %1391 = vmatprep.subr.mxu0 0.0
        %1392 = vmatpush1.msra.mxu0 0.0
        %1393 = vmatprep.subr.mxu0 0.0
        %1394 = vmatpush1.msra.mxu0 0.0
        %1395 = vmatprep.subr.mxu0 0.0
        %1396 = vmatpush1.msra.mxu0 0.0
        %1397 = vmatprep.subr.mxu0 0.0
        %1398 = vmatpush1.msra.mxu0 0.0
        %1399 = vmatprep.subr.mxu0 0.0
        %1400 = vmatpush1.msra.mxu0 0.0
        %1401 = vmatprep.subr.mxu0 0.0
        %1402 = vmatpush1.msra.mxu0 0.0
        %1403 = vmatprep.subr.mxu0 0.0
        %1404 = vmatpush1.msra.mxu0 0.0
        %1405 = vmatprep.subr.mxu0 0.0
        %1406 = vmatpush1.msra.mxu0 0.0
        %1407 = vmatprep.subr.mxu0 0.0
        %1408 = vmatpush1.msra.mxu0 0.0
        %1409 = vmatprep.subr.mxu0 0.0
        %1410 = vmatpush1.msra.mxu0 0.0
        %1411 = vmatprep.subr.mxu0 0.0
        %1412 = vmatpush1.msra.mxu0 0.0
        %1413 = vmatprep.subr.mxu0 0.0
        %1414 = vmatpush1.msra.mxu0 0.0
        %1415 = vmatprep.subr.mxu0 0.0
        %1416 = vmatpush1.msra.mxu0 0.0
        %1417 = vmatprep.subr.mxu0 0.0
        %1418 = vmatpush1.msra.mxu0 0.0
        %1419 = vmatprep.subr.mxu0 0.0
        %1420 = vmatpush1.msra.mxu0 0.0
        %1421 = vmatprep.subr.mxu0 0.0
        %1422 = vmatpush1.msra.mxu0 0.0
        %1423 = vmatprep.subr.mxu0 0.0
        %1424 = vmatpush1.msra.mxu0 0.0
        %1425 = vmatprep.mubr.f32.mxu0 0.0
        %1426 = vmatmul.mubr.f32.gmra.mrb[0].mxu0 %v1146
        %v1427 = vpop.f32.mrb[0].mxu0
        %v1428 = vadd.f32 0.0, %v1427
        %v1429 = vpop.f32.mrb[0].mxu0
        %v1430 = vadd.f32 0.0, %v1429
        %1431 = vdwg.mxu0
        %v1432 = vadd.f32 %v1100, %v1215
        %v1433 = vadd.f32 %v1101, %v1217
        %v1434 = vadd.f32 %v1102, %v1286
        %v1435 = vadd.f32 %v1103, %v1288
        %v1436 = vadd.f32 %v1104, %v1357
        %v1437 = vadd.f32 %v1105, %v1359
        %v1438 = vadd.f32 %v1106, %v1428
        %v1439 = vadd.f32 %v1107, %v1430
        %1440 = vst [vmem:[#allocation2] sm:$0xff] %v1432
        %1441 = vst [vmem:[#allocation2 + $0x8] sm:$0xff] %v1433
        %1442 = vst [vmem:[#allocation2 + $0x10] sm:$0xff] %v1434
        %1443 = vst [vmem:[#allocation2 + $0x18] sm:$0xff] %v1435
        %1444 = vst [vmem:[#allocation2 + $0x20] sm:$0xff] %v1436
        %1445 = vst [vmem:[#allocation2 + $0x28] sm:$0xff] %v1437
        %1446 = vst [vmem:[#allocation2 + $0x30] sm:$0xff] %v1438
        %1447 = vst [vmem:[#allocation2 + $0x38] sm:$0xff] %v1439
        %p1448 = scmp.eq.s32.totalorder %s27, 1
        // Predicated region
        $region65: #{tpu_custom_call.1} parent=59 // pred_check
          %p1449 = pneg %p1448
        $region66: #{tpu_custom_call.1} parent=59 // pred_check_branch
          %1451 = sbr.rel (%p1449) target = $region68
        $region67: #{tpu_custom_call.1} parent=59 // pred_region
          %v1452 = vld [vmem:[#allocation2] sm:$0xff]
          %v1453 = vld [vmem:[#allocation2 + $0x8] sm:$0xff]
          %v1454 = vld [vmem:[#allocation2 + $0x10] sm:$0xff]
          %v1455 = vld [vmem:[#allocation2 + $0x18] sm:$0xff]
          %v1456 = vld [vmem:[#allocation2 + $0x20] sm:$0xff]
          %v1457 = vld [vmem:[#allocation2 + $0x28] sm:$0xff]
          %v1458 = vld [vmem:[#allocation2 + $0x30] sm:$0xff]
          %v1459 = vld [vmem:[#allocation2 + $0x38] sm:$0xff]
          %v1460 = vld [vmem:[%s4] sm:$0xff]
          %v1461 = vld [vmem:[%s4 + $0x8] sm:$0xff]
          %v1462 = vld [vmem:[%s4 + $0x10] sm:$0xff]
          %v1463 = vld [vmem:[%s4 + $0x18] sm:$0xff]
          %v1464 = vld [vmem:[%s4 + $0x20] sm:$0xff]
          %v1465 = vld [vmem:[%s4 + $0x28] sm:$0xff]
          %v1466 = vld [vmem:[%s4 + $0x30] sm:$0xff]
          %v1467 = vld [vmem:[%s4 + $0x38] sm:$0xff]
          %v1468 = vld [vmem:[%s4 + $0x40] sm:$0xff]
          %v1469 = vld [vmem:[%s4 + $0x48] sm:$0xff]
          %v1470 = vld [vmem:[%s4 + $0x50] sm:$0xff]
          %v1471 = vld [vmem:[%s4 + $0x58] sm:$0xff]
          %v1472 = vld [vmem:[%s4 + $0x60] sm:$0xff]
          %v1473 = vld [vmem:[%s4 + $0x68] sm:$0xff]
          %v1474 = vld [vmem:[%s4 + $0x70] sm:$0xff]
          %v1475 = vld [vmem:[%s4 + $0x78] sm:$0xff]
          %v1476 = vld [vmem:[%s4 + $0x80] sm:$0xff]
          %v1477 = vld [vmem:[%s4 + $0x88] sm:$0xff]
          %v1478 = vld [vmem:[%s4 + $0x90] sm:$0xff]
          %v1479 = vld [vmem:[%s4 + $0x98] sm:$0xff]
          %v1480 = vld [vmem:[%s4 + $0xa0] sm:$0xff]
          %v1481 = vld [vmem:[%s4 + $0xa8] sm:$0xff]
          %v1482 = vld [vmem:[%s4 + $0xb0] sm:$0xff]
          %v1483 = vld [vmem:[%s4 + $0xb8] sm:$0xff]
          %v1484 = vld [vmem:[%s4 + $0xc0] sm:$0xff]
          %v1485 = vld [vmem:[%s4 + $0xc8] sm:$0xff]
          %v1486 = vld [vmem:[%s4 + $0xd0] sm:$0xff]
          %v1487 = vld [vmem:[%s4 + $0xd8] sm:$0xff]
          %v1488 = vld [vmem:[%s4 + $0xe0] sm:$0xff]
          %v1489 = vld [vmem:[%s4 + $0xe8] sm:$0xff]
          %v1490 = vld [vmem:[%s4 + $0xf0] sm:$0xff]
          %v1491 = vld [vmem:[%s4 + $0xf8] sm:$0xff]
          %v1492 = vld [vmem:[%s4 + $0x100] sm:$0xff]
          %v1493 = vld [vmem:[%s4 + $0x108] sm:$0xff]
          %v1494 = vld [vmem:[%s4 + $0x110] sm:$0xff]
          %v1495 = vld [vmem:[%s4 + $0x118] sm:$0xff]
          %v1496 = vld [vmem:[%s4 + $0x120] sm:$0xff]
          %v1497 = vld [vmem:[%s4 + $0x128] sm:$0xff]
          %v1498 = vld [vmem:[%s4 + $0x130] sm:$0xff]
          %v1499 = vld [vmem:[%s4 + $0x138] sm:$0xff]
          %v1500 = vld [vmem:[%s4 + $0x140] sm:$0xff]
          %v1501 = vld [vmem:[%s4 + $0x148] sm:$0xff]
          %v1502 = vld [vmem:[%s4 + $0x150] sm:$0xff]
          %v1503 = vld [vmem:[%s4 + $0x158] sm:$0xff]
          %v1504 = vld [vmem:[%s4 + $0x160] sm:$0xff]
          %v1505 = vld [vmem:[%s4 + $0x168] sm:$0xff]
          %v1506 = vld [vmem:[%s4 + $0x170] sm:$0xff]
          %v1507 = vld [vmem:[%s4 + $0x178] sm:$0xff]
          %v1508 = vld [vmem:[%s4 + $0x180] sm:$0xff]
          %v1509 = vld [vmem:[%s4 + $0x188] sm:$0xff]
          %v1510 = vld [vmem:[%s4 + $0x190] sm:$0xff]
          %v1511 = vld [vmem:[%s4 + $0x198] sm:$0xff]
          %v1512 = vld [vmem:[%s4 + $0x1a0] sm:$0xff]
          %v1513 = vld [vmem:[%s4 + $0x1a8] sm:$0xff]
          %v1514 = vld [vmem:[%s4 + $0x1b0] sm:$0xff]
          %v1515 = vld [vmem:[%s4 + $0x1b8] sm:$0xff]
          %v1516 = vld [vmem:[%s4 + $0x1c0] sm:$0xff]
          %v1517 = vld [vmem:[%s4 + $0x1c8] sm:$0xff]
          %v1518 = vld [vmem:[%s4 + $0x1d0] sm:$0xff]
          %v1519 = vld [vmem:[%s4 + $0x1d8] sm:$0xff]
          %v1520 = vld [vmem:[%s4 + $0x1e0] sm:$0xff]
          %v1521 = vld [vmem:[%s4 + $0x1e8] sm:$0xff]
          %v1522 = vld [vmem:[%s4 + $0x1f0] sm:$0xff]
          %v1523 = vld [vmem:[%s4 + $0x1f8] sm:$0xff]
          %v1524 = vld [vmem:[%s4 + $0x200] sm:$0xff]
          %v1525 = vld [vmem:[%s4 + $0x208] sm:$0xff]
          %v1526 = vld [vmem:[%s4 + $0x210] sm:$0xff]
          %v1527 = vld [vmem:[%s4 + $0x218] sm:$0xff]
          %v1528 = vld [vmem:[%s4 + $0x220] sm:$0xff]
          %v1529 = vld [vmem:[%s4 + $0x228] sm:$0xff]
          %v1530 = vld [vmem:[%s4 + $0x230] sm:$0xff]
          %v1531 = vld [vmem:[%s4 + $0x238] sm:$0xff]
          %v1532 = vld [vmem:[%s4 + $0x240] sm:$0xff]
          %v1533 = vld [vmem:[%s4 + $0x248] sm:$0xff]
          %v1534 = vld [vmem:[%s4 + $0x250] sm:$0xff]
          %v1535 = vld [vmem:[%s4 + $0x258] sm:$0xff]
          %v1536 = vld [vmem:[%s4 + $0x260] sm:$0xff]
          %v1537 = vld [vmem:[%s4 + $0x268] sm:$0xff]
          %v1538 = vld [vmem:[%s4 + $0x270] sm:$0xff]
          %v1539 = vld [vmem:[%s4 + $0x278] sm:$0xff]
          %v1540 = vld [vmem:[%s4 + $0x280] sm:$0xff]
          %v1541 = vld [vmem:[%s4 + $0x288] sm:$0xff]
          %v1542 = vld [vmem:[%s4 + $0x290] sm:$0xff]
          %v1543 = vld [vmem:[%s4 + $0x298] sm:$0xff]
          %v1544 = vld [vmem:[%s4 + $0x2a0] sm:$0xff]
          %v1545 = vld [vmem:[%s4 + $0x2a8] sm:$0xff]
          %v1546 = vld [vmem:[%s4 + $0x2b0] sm:$0xff]
          %v1547 = vld [vmem:[%s4 + $0x2b8] sm:$0xff]
          %v1548 = vld [vmem:[%s4 + $0x2c0] sm:$0xff]
          %v1549 = vld [vmem:[%s4 + $0x2c8] sm:$0xff]
          %v1550 = vld [vmem:[%s4 + $0x2d0] sm:$0xff]
          %v1551 = vld [vmem:[%s4 + $0x2d8] sm:$0xff]
          %v1552 = vld [vmem:[%s4 + $0x2e0] sm:$0xff]
          %v1553 = vld [vmem:[%s4 + $0x2e8] sm:$0xff]
          %v1554 = vld [vmem:[%s4 + $0x2f0] sm:$0xff]
          %v1555 = vld [vmem:[%s4 + $0x2f8] sm:$0xff]
          %v1556 = vld [vmem:[%s4 + $0x300] sm:$0xff]
          %v1557 = vld [vmem:[%s4 + $0x308] sm:$0xff]
          %v1558 = vld [vmem:[%s4 + $0x310] sm:$0xff]
          %v1559 = vld [vmem:[%s4 + $0x318] sm:$0xff]
          %v1560 = vld [vmem:[%s4 + $0x320] sm:$0xff]
          %v1561 = vld [vmem:[%s4 + $0x328] sm:$0xff]
          %v1562 = vld [vmem:[%s4 + $0x330] sm:$0xff]
          %v1563 = vld [vmem:[%s4 + $0x338] sm:$0xff]
          %v1564 = vld [vmem:[%s4 + $0x340] sm:$0xff]
          %v1565 = vld [vmem:[%s4 + $0x348] sm:$0xff]
          %v1566 = vld [vmem:[%s4 + $0x350] sm:$0xff]
          %v1567 = vld [vmem:[%s4 + $0x358] sm:$0xff]
          %v1568 = vld [vmem:[%s4 + $0x360] sm:$0xff]
          %v1569 = vld [vmem:[%s4 + $0x368] sm:$0xff]
          %v1570 = vld [vmem:[%s4 + $0x370] sm:$0xff]
          %v1571 = vld [vmem:[%s4 + $0x378] sm:$0xff]
          %v1572 = vld [vmem:[%s4 + $0x380] sm:$0xff]
          %v1573 = vld [vmem:[%s4 + $0x388] sm:$0xff]
          %v1574 = vld [vmem:[%s4 + $0x390] sm:$0xff]
          %v1575 = vld [vmem:[%s4 + $0x398] sm:$0xff]
          %v1576 = vld [vmem:[%s4 + $0x3a0] sm:$0xff]
          %v1577 = vld [vmem:[%s4 + $0x3a8] sm:$0xff]
          %v1578 = vld [vmem:[%s4 + $0x3b0] sm:$0xff]
          %v1579 = vld [vmem:[%s4 + $0x3b8] sm:$0xff]
          %v1580 = vld [vmem:[%s4 + $0x3c0] sm:$0xff]
          %v1581 = vld [vmem:[%s4 + $0x3c8] sm:$0xff]
          %v1582 = vld [vmem:[%s4 + $0x3d0] sm:$0xff]
          %v1583 = vld [vmem:[%s4 + $0x3d8] sm:$0xff]
          %v1584 = vld [vmem:[%s4 + $0x3e0] sm:$0xff]
          %v1585 = vld [vmem:[%s4 + $0x3e8] sm:$0xff]
          %v1586 = vld [vmem:[%s4 + $0x3f0] sm:$0xff]
          %v1587 = vld [vmem:[%s4 + $0x3f8] sm:$0xff]
          %v1588 = vld [vmem:[%s5] sm:$0x1]
          %v1590 = vlaneseq
          %v1591 = vshrl.u32 %v1590, 7
          %v1592 = vsub.s32 0, %v1591
          %v1593 = vrot.slane %v1588, %v1592
          %1595 = vmatprep.subr.mxu0 0.0
          %1596 = vmatpush1.msra.mxu0 %v1460
          %1597 = vmatprep.subr.mxu0 0.0
          %1598 = vmatpush1.msra.mxu0 %v1461
          %1599 = vmatprep.subr.mxu0 0.0
          %1600 = vmatpush1.msra.mxu0 %v1462
          %1601 = vmatprep.subr.mxu0 0.0
          %1602 = vmatpush1.msra.mxu0 %v1463
          %1603 = vmatprep.subr.mxu0 0.0
          %1604 = vmatpush1.msra.mxu0 %v1464
          %1605 = vmatprep.subr.mxu0 0.0
          %1606 = vmatpush1.msra.mxu0 %v1465
          %1607 = vmatprep.subr.mxu0 0.0
          %1608 = vmatpush1.msra.mxu0 %v1466
          %1609 = vmatprep.subr.mxu0 0.0
          %1610 = vmatpush1.msra.mxu0 %v1467
          %1611 = vmatprep.subr.mxu0 0.0
          %1612 = vmatpush1.msra.mxu0 %v1468
          %1613 = vmatprep.subr.mxu0 0.0
          %1614 = vmatpush1.msra.mxu0 %v1469
          %1615 = vmatprep.subr.mxu0 0.0
          %1616 = vmatpush1.msra.mxu0 %v1470
          %1617 = vmatprep.subr.mxu0 0.0
          %1618 = vmatpush1.msra.mxu0 %v1471
          %1619 = vmatprep.subr.mxu0 0.0
          %1620 = vmatpush1.msra.mxu0 %v1472
          %1621 = vmatprep.subr.mxu0 0.0
          %1622 = vmatpush1.msra.mxu0 %v1473
          %1623 = vmatprep.subr.mxu0 0.0
          %1624 = vmatpush1.msra.mxu0 %v1474
          %1625 = vmatprep.subr.mxu0 0.0
          %1626 = vmatpush1.msra.mxu0 %v1475
          %1627 = vmatprep.subr.mxu0 0.0
          %1628 = vmatpush1.msra.mxu0 %v1476
          %1629 = vmatprep.subr.mxu0 0.0
          %1630 = vmatpush1.msra.mxu0 %v1477
          %1631 = vmatprep.subr.mxu0 0.0
          %1632 = vmatpush1.msra.mxu0 %v1478
          %1633 = vmatprep.subr.mxu0 0.0
          %1634 = vmatpush1.msra.mxu0 %v1479
          %1635 = vmatprep.subr.mxu0 0.0
          %1636 = vmatpush1.msra.mxu0 %v1480
          %1637 = vmatprep.subr.mxu0 0.0
          %1638 = vmatpush1.msra.mxu0 %v1481
          %1639 = vmatprep.subr.mxu0 0.0
          %1640 = vmatpush1.msra.mxu0 %v1482
          %1641 = vmatprep.subr.mxu0 0.0
          %1642 = vmatpush1.msra.mxu0 %v1483
          %1643 = vmatprep.subr.mxu0 0.0
          %1644 = vmatpush1.msra.mxu0 %v1484
          %1645 = vmatprep.subr.mxu0 0.0
          %1646 = vmatpush1.msra.mxu0 %v1485
          %1647 = vmatprep.subr.mxu0 0.0
          %1648 = vmatpush1.msra.mxu0 %v1486
          %1649 = vmatprep.subr.mxu0 0.0
          %1650 = vmatpush1.msra.mxu0 %v1487
          %1651 = vmatprep.subr.mxu0 0.0
          %1652 = vmatpush1.msra.mxu0 %v1488
          %1653 = vmatprep.subr.mxu0 0.0
          %1654 = vmatpush1.msra.mxu0 %v1489
          %1655 = vmatprep.subr.mxu0 0.0
          %1656 = vmatpush1.msra.mxu0 %v1490
          %1657 = vmatprep.subr.mxu0 0.0
          %1658 = vmatpush1.msra.mxu0 %v1491
          %1659 = vmatprep.mubr.f32.mxu0 %v1453
          %1660 = vmatmul.mubr.f32.gmra.mrb[0].mxu0 %v1452
          %v1661 = vpop.f32.mrb[0].mxu0
          %v1662 = vadd.f32 %v1593, %v1661
          %v1663 = vpop.f32.mrb[0].mxu0
          %1664 = vdwg.mxu0
          %1665 = vmatprep.subr.mxu0 0.0
          %1666 = vmatpush1.msra.mxu0 %v1492
          %1667 = vmatprep.subr.mxu0 0.0
          %1668 = vmatpush1.msra.mxu0 %v1493
          %1669 = vmatprep.subr.mxu0 0.0
          %1670 = vmatpush1.msra.mxu0 %v1494
          %1671 = vmatprep.subr.mxu0 0.0
          %1672 = vmatpush1.msra.mxu0 %v1495
          %1673 = vmatprep.subr.mxu0 0.0
          %1674 = vmatpush1.msra.mxu0 %v1496
          %1675 = vmatprep.subr.mxu0 0.0
          %1676 = vmatpush1.msra.mxu0 %v1497
          %1677 = vmatprep.subr.mxu0 0.0
          %1678 = vmatpush1.msra.mxu0 %v1498
          %1679 = vmatprep.subr.mxu0 0.0
          %1680 = vmatpush1.msra.mxu0 %v1499
          %1681 = vmatprep.subr.mxu0 0.0
          %1682 = vmatpush1.msra.mxu0 %v1500
          %1683 = vmatprep.subr.mxu0 0.0
          %1684 = vmatpush1.msra.mxu0 %v1501
          %1685 = vmatprep.subr.mxu0 0.0
          %1686 = vmatpush1.msra.mxu0 %v1502
          %1687 = vmatprep.subr.mxu0 0.0
          %1688 = vmatpush1.msra.mxu0 %v1503
          %1689 = vmatprep.subr.mxu0 0.0
          %1690 = vmatpush1.msra.mxu0 %v1504
          %1691 = vmatprep.subr.mxu0 0.0
          %1692 = vmatpush1.msra.mxu0 %v1505
          %1693 = vmatprep.subr.mxu0 0.0
          %1694 = vmatpush1.msra.mxu0 %v1506
          %1695 = vmatprep.subr.mxu0 0.0
          %1696 = vmatpush1.msra.mxu0 %v1507
          %1697 = vmatprep.subr.mxu0 0.0
          %1698 = vmatpush1.msra.mxu0 %v1508
          %1699 = vmatprep.subr.mxu0 0.0
          %1700 = vmatpush1.msra.mxu0 %v1509
          %1701 = vmatprep.subr.mxu0 0.0
          %1702 = vmatpush1.msra.mxu0 %v1510
          %1703 = vmatprep.subr.mxu0 0.0
          %1704 = vmatpush1.msra.mxu0 %v1511
          %1705 = vmatprep.subr.mxu0 0.0
          %1706 = vmatpush1.msra.mxu0 %v1512
          %1707 = vmatprep.subr.mxu0 0.0
          %1708 = vmatpush1.msra.mxu0 %v1513
          %1709 = vmatprep.subr.mxu0 0.0
          %1710 = vmatpush1.msra.mxu0 %v1514
          %1711 = vmatprep.subr.mxu0 0.0
          %1712 = vmatpush1.msra.mxu0 %v1515
          %1713 = vmatprep.subr.mxu0 0.0
          %1714 = vmatpush1.msra.mxu0 %v1516
          %1715 = vmatprep.subr.mxu0 0.0
          %1716 = vmatpush1.msra.mxu0 %v1517
          %1717 = vmatprep.subr.mxu0 0.0
          %1718 = vmatpush1.msra.mxu0 %v1518
          %1719 = vmatprep.subr.mxu0 0.0
          %1720 = vmatpush1.msra.mxu0 %v1519
          %1721 = vmatprep.subr.mxu0 0.0
          %1722 = vmatpush1.msra.mxu0 %v1520
          %1723 = vmatprep.subr.mxu0 0.0
          %1724 = vmatpush1.msra.mxu0 %v1521
          %1725 = vmatprep.subr.mxu0 0.0
          %1726 = vmatpush1.msra.mxu0 %v1522
          %1727 = vmatprep.subr.mxu0 0.0
          %1728 = vmatpush1.msra.mxu0 %v1523
          %1729 = vmatprep.mubr.f32.mxu0 %v1455
          %1730 = vmatmul.mubr.f32.gmra.mrb[0].mxu0 %v1454
          %v1731 = vpop.f32.mrb[0].mxu0
          %v1732 = vadd.f32 %v1662, %v1731
          %v1733 = vpop.f32.mrb[0].mxu0
          %1734 = vdwg.mxu0
          %1735 = vmatprep.subr.mxu0 0.0
          %1736 = vmatpush1.msra.mxu0 %v1524
          %1737 = vmatprep.subr.mxu0 0.0
          %1738 = vmatpush1.msra.mxu0 %v1525
          %1739 = vmatprep.subr.mxu0 0.0
          %1740 = vmatpush1.msra.mxu0 %v1526
          %1741 = vmatprep.subr.mxu0 0.0
          %1742 = vmatpush1.msra.mxu0 %v1527
          %1743 = vmatprep.subr.mxu0 0.0
          %1744 = vmatpush1.msra.mxu0 %v1528
          %1745 = vmatprep.subr.mxu0 0.0
          %1746 = vmatpush1.msra.mxu0 %v1529
          %1747 = vmatprep.subr.mxu0 0.0
          %1748 = vmatpush1.msra.mxu0 %v1530
          %1749 = vmatprep.subr.mxu0 0.0
          %1750 = vmatpush1.msra.mxu0 %v1531
          %1751 = vmatprep.subr.mxu0 0.0
          %1752 = vmatpush1.msra.mxu0 %v1532
          %1753 = vmatprep.subr.mxu0 0.0
          %1754 = vmatpush1.msra.mxu0 %v1533
          %1755 = vmatprep.subr.mxu0 0.0
          %1756 = vmatpush1.msra.mxu0 %v1534
          %1757 = vmatprep.subr.mxu0 0.0
          %1758 = vmatpush1.msra.mxu0 %v1535
          %1759 = vmatprep.subr.mxu0 0.0
          %1760 = vmatpush1.msra.mxu0 %v1536
          %1761 = vmatprep.subr.mxu0 0.0
          %1762 = vmatpush1.msra.mxu0 %v1537
          %1763 = vmatprep.subr.mxu0 0.0
          %1764 = vmatpush1.msra.mxu0 %v1538
          %1765 = vmatprep.subr.mxu0 0.0
          %1766 = vmatpush1.msra.mxu0 %v1539
          %1767 = vmatprep.subr.mxu0 0.0
          %1768 = vmatpush1.msra.mxu0 %v1540
          %1769 = vmatprep.subr.mxu0 0.0
          %1770 = vmatpush1.msra.mxu0 %v1541
          %1771 = vmatprep.subr.mxu0 0.0
          %1772 = vmatpush1.msra.mxu0 %v1542
          %1773 = vmatprep.subr.mxu0 0.0
          %1774 = vmatpush1.msra.mxu0 %v1543
          %1775 = vmatprep.subr.mxu0 0.0
          %1776 = vmatpush1.msra.mxu0 %v1544
          %1777 = vmatprep.subr.mxu0 0.0
          %1778 = vmatpush1.msra.mxu0 %v1545
          %1779 = vmatprep.subr.mxu0 0.0
          %1780 = vmatpush1.msra.mxu0 %v1546
          %1781 = vmatprep.subr.mxu0 0.0
          %1782 = vmatpush1.msra.mxu0 %v1547
          %1783 = vmatprep.subr.mxu0 0.0
          %1784 = vmatpush1.msra.mxu0 %v1548
          %1785 = vmatprep.subr.mxu0 0.0
          %1786 = vmatpush1.msra.mxu0 %v1549
          %1787 = vmatprep.subr.mxu0 0.0
          %1788 = vmatpush1.msra.mxu0 %v1550
          %1789 = vmatprep.subr.mxu0 0.0
          %1790 = vmatpush1.msra.mxu0 %v1551
          %1791 = vmatprep.subr.mxu0 0.0
          %1792 = vmatpush1.msra.mxu0 %v1552
          %1793 = vmatprep.subr.mxu0 0.0
          %1794 = vmatpush1.msra.mxu0 %v1553
          %1795 = vmatprep.subr.mxu0 0.0
          %1796 = vmatpush1.msra.mxu0 %v1554
          %1797 = vmatprep.subr.mxu0 0.0
          %1798 = vmatpush1.msra.mxu0 %v1555
          %1799 = vmatprep.mubr.f32.mxu0 %v1457
          %1800 = vmatmul.mubr.f32.gmra.mrb[0].mxu0 %v1456
          %v1801 = vpop.f32.mrb[0].mxu0
          %v1802 = vadd.f32 %v1732, %v1801
          %v1803 = vpop.f32.mrb[0].mxu0
          %1804 = vdwg.mxu0
          %1805 = vmatprep.subr.mxu0 0.0
          %1806 = vmatpush1.msra.mxu0 %v1556
          %1807 = vmatprep.subr.mxu0 0.0
          %1808 = vmatpush1.msra.mxu0 %v1557
          %1809 = vmatprep.subr.mxu0 0.0
          %1810 = vmatpush1.msra.mxu0 %v1558
          %1811 = vmatprep.subr.mxu0 0.0
          %1812 = vmatpush1.msra.mxu0 %v1559
          %1813 = vmatprep.subr.mxu0 0.0
          %1814 = vmatpush1.msra.mxu0 %v1560
          %1815 = vmatprep.subr.mxu0 0.0
          %1816 = vmatpush1.msra.mxu0 %v1561
          %1817 = vmatprep.subr.mxu0 0.0
          %1818 = vmatpush1.msra.mxu0 %v1562
          %1819 = vmatprep.subr.mxu0 0.0
          %1820 = vmatpush1.msra.mxu0 %v1563
          %1821 = vmatprep.subr.mxu0 0.0
          %1822 = vmatpush1.msra.mxu0 %v1564
          %1823 = vmatprep.subr.mxu0 0.0
          %1824 = vmatpush1.msra.mxu0 %v1565
          %1825 = vmatprep.subr.mxu0 0.0
          %1826 = vmatpush1.msra.mxu0 %v1566
          %1827 = vmatprep.subr.mxu0 0.0
          %1828 = vmatpush1.msra.mxu0 %v1567
          %1829 = vmatprep.subr.mxu0 0.0
          %1830 = vmatpush1.msra.mxu0 %v1568
          %1831 = vmatprep.subr.mxu0 0.0
          %1832 = vmatpush1.msra.mxu0 %v1569
          %1833 = vmatprep.subr.mxu0 0.0
          %1834 = vmatpush1.msra.mxu0 %v1570
          %1835 = vmatprep.subr.mxu0 0.0
          %1836 = vmatpush1.msra.mxu0 %v1571
          %1837 = vmatprep.subr.mxu0 0.0
          %1838 = vmatpush1.msra.mxu0 %v1572
          %1839 = vmatprep.subr.mxu0 0.0
          %1840 = vmatpush1.msra.mxu0 %v1573
          %1841 = vmatprep.subr.mxu0 0.0
          %1842 = vmatpush1.msra.mxu0 %v1574
          %1843 = vmatprep.subr.mxu0 0.0
          %1844 = vmatpush1.msra.mxu0 %v1575
          %1845 = vmatprep.subr.mxu0 0.0
          %1846 = vmatpush1.msra.mxu0 %v1576
          %1847 = vmatprep.subr.mxu0 0.0
          %1848 = vmatpush1.msra.mxu0 %v1577
          %1849 = vmatprep.subr.mxu0 0.0
          %1850 = vmatpush1.msra.mxu0 %v1578
          %1851 = vmatprep.subr.mxu0 0.0
          %1852 = vmatpush1.msra.mxu0 %v1579
          %1853 = vmatprep.subr.mxu0 0.0
          %1854 = vmatpush1.msra.mxu0 %v1580
          %1855 = vmatprep.subr.mxu0 0.0
          %1856 = vmatpush1.msra.mxu0 %v1581
          %1857 = vmatprep.subr.mxu0 0.0
          %1858 = vmatpush1.msra.mxu0 %v1582
          %1859 = vmatprep.subr.mxu0 0.0
          %1860 = vmatpush1.msra.mxu0 %v1583
          %1861 = vmatprep.subr.mxu0 0.0
          %1862 = vmatpush1.msra.mxu0 %v1584
          %1863 = vmatprep.subr.mxu0 0.0
          %1864 = vmatpush1.msra.mxu0 %v1585
          %1865 = vmatprep.subr.mxu0 0.0
          %1866 = vmatpush1.msra.mxu0 %v1586
          %1867 = vmatprep.subr.mxu0 0.0
          %1868 = vmatpush1.msra.mxu0 %v1587
          %1869 = vmatprep.mubr.f32.mxu0 %v1459
          %1870 = vmatmul.mubr.f32.gmra.mrb[0].mxu0 %v1458
          %v1871 = vpop.f32.mrb[0].mxu0
          %v1872 = vadd.f32 %v1802, %v1871
          %v1873 = vpop.f32.mrb[0].mxu0
          %1874 = vdwg.mxu0
          %v1875 = vmax.f32 %v1872, 0.0
          %v1876 = vld [vmem:[%s6] sm:$0xff]
          %v1877 = vld [vmem:[%s6 + $0x8] sm:$0xff]
          %v1878 = vld [vmem:[%s6 + $0x10] sm:$0xff]
          %v1879 = vld [vmem:[%s6 + $0x18] sm:$0xff]
          %v1880 = vld [vmem:[%s6 + $0x20] sm:$0xff]
          %v1881 = vld [vmem:[%s6 + $0x28] sm:$0xff]
          %v1882 = vld [vmem:[%s6 + $0x30] sm:$0xff]
          %v1883 = vld [vmem:[%s6 + $0x38] sm:$0xff]
          %v1884 = vld [vmem:[%s7] sm:$0x1]
          %v1886 = vlaneseq
          %v1887 = vshrl.u32 %v1886, 7
          %v1888 = vsub.s32 0, %v1887
          %v1889 = vrot.slane %v1884, %v1888
          %vm1891 = vcmask 523264
          %v1893 = vsel %vm1891, %v1875, 0
          %1895 = vmatprep.subr.mxu0 0.0
          %1896 = vmatpush1.msra.mxu0 %v1876
          %1897 = vmatprep.subr.mxu0 0.0
          %1898 = vmatpush1.msra.mxu0 %v1877
          %1899 = vmatprep.subr.mxu0 0.0
          %1900 = vmatpush1.msra.mxu0 %v1878
          %1901 = vmatprep.subr.mxu0 0.0
          %1902 = vmatpush1.msra.mxu0 %v1879
          %1903 = vmatprep.subr.mxu0 0.0
          %1904 = vmatpush1.msra.mxu0 %v1880
          %1905 = vmatprep.subr.mxu0 0.0
          %1906 = vmatpush1.msra.mxu0 %v1881
          %1907 = vmatprep.subr.mxu0 0.0
          %1908 = vmatpush1.msra.mxu0 %v1882
          %1909 = vmatprep.subr.mxu0 0.0
          %1910 = vmatpush1.msra.mxu0 %v1883
          %1911 = vmatprep.subr.mxu0 0.0
          %1912 = vmatpush1.msra.mxu0 0.0
          %1913 = vmatprep.subr.mxu0 0.0
          %1914 = vmatpush1.msra.mxu0 0.0
          %1915 = vmatprep.subr.mxu0 0.0
          %1916 = vmatpush1.msra.mxu0 0.0
          %1917 = vmatprep.subr.mxu0 0.0
          %1918 = vmatpush1.msra.mxu0 0.0
          %1919 = vmatprep.subr.mxu0 0.0
          %1920 = vmatpush1.msra.mxu0 0.0
          %1921 = vmatprep.subr.mxu0 0.0
          %1922 = vmatpush1.msra.mxu0 0.0
          %1923 = vmatprep.subr.mxu0 0.0
          %1924 = vmatpush1.msra.mxu0 0.0
          %1925 = vmatprep.subr.mxu0 0.0
          %1926 = vmatpush1.msra.mxu0 0.0
          %1927 = vmatprep.subr.mxu0 0.0
          %1928 = vmatpush1.msra.mxu0 0.0
          %1929 = vmatprep.subr.mxu0 0.0
          %1930 = vmatpush1.msra.mxu0 0.0
          %1931 = vmatprep.subr.mxu0 0.0
          %1932 = vmatpush1.msra.mxu0 0.0
          %1933 = vmatprep.subr.mxu0 0.0
          %1934 = vmatpush1.msra.mxu0 0.0
          %1935 = vmatprep.subr.mxu0 0.0
          %1936 = vmatpush1.msra.mxu0 0.0
          %1937 = vmatprep.subr.mxu0 0.0
          %1938 = vmatpush1.msra.mxu0 0.0
          %1939 = vmatprep.subr.mxu0 0.0
          %1940 = vmatpush1.msra.mxu0 0.0
          %1941 = vmatprep.subr.mxu0 0.0
          %1942 = vmatpush1.msra.mxu0 0.0
          %1943 = vmatprep.subr.mxu0 0.0
          %1944 = vmatpush1.msra.mxu0 0.0
          %1945 = vmatprep.subr.mxu0 0.0
          %1946 = vmatpush1.msra.mxu0 0.0
          %1947 = vmatprep.subr.mxu0 0.0
          %1948 = vmatpush1.msra.mxu0 0.0
          %1949 = vmatprep.subr.mxu0 0.0
          %1950 = vmatpush1.msra.mxu0 0.0
          %1951 = vmatprep.subr.mxu0 0.0
          %1952 = vmatpush1.msra.mxu0 0.0
          %1953 = vmatprep.subr.mxu0 0.0
          %1954 = vmatpush1.msra.mxu0 0.0
          %1955 = vmatprep.subr.mxu0 0.0
          %1956 = vmatpush1.msra.mxu0 0.0
          %1957 = vmatprep.subr.mxu0 0.0
          %1958 = vmatpush1.msra.mxu0 0.0
          %1959 = vmatprep.mubr.f32.mxu0 0.0
          %1960 = vmatmul.mubr.f32.gmra.mrb[0].mxu0 %v1893
          %v1961 = vpop.f32.mrb[0].mxu0
          %v1962 = vadd.f32 %v1889, %v1961
          %v1963 = vpop.f32.mrb[0].mxu0
          %1964 = vdwg.mxu0
          %v1965 = vmax.f32 %v1962, 0.0
          %v1966 = vld [vmem:[%s8] sm:$0xff]
          %v1967 = vld [vmem:[%s8 + $0x8] sm:$0xff]
          %v1968 = vld [vmem:[%s8 + $0x10] sm:$0xff]
          %v1969 = vld [vmem:[%s8 + $0x18] sm:$0xff]
          %v1970 = vld [vmem:[%s9] sm:$0x1]
          %v1972 = vlaneseq
          %v1973 = vshrl.u32 %v1972, 7
          %v1974 = vsub.s32 0, %v1973
          %v1975 = vrot.slane %v1970, %v1974
          %v1978 = vsel %vm1144, %v1965, 0
          %1980 = vmatprep.subr.mxu0 0.0
          %1981 = vmatpush1.msra.mxu0 %v1966
          %1982 = vmatprep.subr.mxu0 0.0
          %1983 = vmatpush1.msra.mxu0 %v1967
          %1984 = vmatprep.subr.mxu0 0.0
          %1985 = vmatpush1.msra.mxu0 %v1968
          %1986 = vmatprep.subr.mxu0 0.0
          %1987 = vmatpush1.msra.mxu0 %v1969
          %1988 = vmatprep.subr.mxu0 0.0
          %1989 = vmatpush1.msra.mxu0 0.0
          %1990 = vmatprep.subr.mxu0 0.0
          %1991 = vmatpush1.msra.mxu0 0.0
          %1992 = vmatprep.subr.mxu0 0.0
          %1993 = vmatpush1.msra.mxu0 0.0
          %1994 = vmatprep.subr.mxu0 0.0
          %1995 = vmatpush1.msra.mxu0 0.0
          %1996 = vmatprep.subr.mxu0 0.0
          %1997 = vmatpush1.msra.mxu0 0.0
          %1998 = vmatprep.subr.mxu0 0.0
          %1999 = vmatpush1.msra.mxu0 0.0
          %2000 = vmatprep.subr.mxu0 0.0
          %2001 = vmatpush1.msra.mxu0 0.0
          %2002 = vmatprep.subr.mxu0 0.0
          %2003 = vmatpush1.msra.mxu0 0.0
          %2004 = vmatprep.subr.mxu0 0.0
          %2005 = vmatpush1.msra.mxu0 0.0
          %2006 = vmatprep.subr.mxu0 0.0
          %2007 = vmatpush1.msra.mxu0 0.0
          %2008 = vmatprep.subr.mxu0 0.0
          %2009 = vmatpush1.msra.mxu0 0.0
          %2010 = vmatprep.subr.mxu0 0.0
          %2011 = vmatpush1.msra.mxu0 0.0
          %2012 = vmatprep.subr.mxu0 0.0
          %2013 = vmatpush1.msra.mxu0 0.0
          %2014 = vmatprep.subr.mxu0 0.0
          %2015 = vmatpush1.msra.mxu0 0.0
          %2016 = vmatprep.subr.mxu0 0.0
          %2017 = vmatpush1.msra.mxu0 0.0
          %2018 = vmatprep.subr.mxu0 0.0
          %2019 = vmatpush1.msra.mxu0 0.0
          %2020 = vmatprep.subr.mxu0 0.0
          %2021 = vmatpush1.msra.mxu0 0.0
          %2022 = vmatprep.subr.mxu0 0.0
          %2023 = vmatpush1.msra.mxu0 0.0
          %2024 = vmatprep.subr.mxu0 0.0
          %2025 = vmatpush1.msra.mxu0 0.0
          %2026 = vmatprep.subr.mxu0 0.0
          %2027 = vmatpush1.msra.mxu0 0.0
          %2028 = vmatprep.subr.mxu0 0.0
          %2029 = vmatpush1.msra.mxu0 0.0
          %2030 = vmatprep.subr.mxu0 0.0
          %2031 = vmatpush1.msra.mxu0 0.0
          %2032 = vmatprep.subr.mxu0 0.0
          %2033 = vmatpush1.msra.mxu0 0.0
          %2034 = vmatprep.subr.mxu0 0.0
          %2035 = vmatpush1.msra.mxu0 0.0
          %2036 = vmatprep.subr.mxu0 0.0
          %2037 = vmatpush1.msra.mxu0 0.0
          %2038 = vmatprep.subr.mxu0 0.0
          %2039 = vmatpush1.msra.mxu0 0.0
          %2040 = vmatprep.subr.mxu0 0.0
          %2041 = vmatpush1.msra.mxu0 0.0
          %2042 = vmatprep.subr.mxu0 0.0
          %2043 = vmatpush1.msra.mxu0 0.0
          %2044 = vmatprep.mubr.f32.mxu0 0.0
          %2045 = vmatmul.mubr.f32.gmra.mrb[0].mxu0 %v1978
          %v2046 = vpop.f32.mrb[0].mxu0
          %v2047 = vadd.f32 %v1975, %v2046
          %v2048 = vpop.f32.mrb[0].mxu0
          %2049 = vdwg.mxu0
          %2050 = vmax.xlane.f32.xlu0 %v2047
          %v2051 = vpop.xlane.xlu0 %2050
          %v2052 = vsub.f32 %v2047, %v2051
          %v2053 = vmul.f32 %v2052, 1.442695
          %v2054 = vpow.pop %v2053
          %2055 = vadd.xlane.f32.xlu0 %v2054
          %v2056 = vpop.xlane.xlu0 %2055
          %v2057 = vrcp.pop %v2056
          %v2058 = vmul.f32 %v2054, %v2057
          %2059 = vst [vmem:[#allocation3] sm:$0xff] %v2058
        $region68: #{tpu_custom_call.1} parent=59 // pred_fallthru
          _
        // Predicated region
        $region69: #{tpu_custom_call.1} parent=59 // pred_check
          %p2060 = pneg %p276
        $region70: #{tpu_custom_call.1} parent=59 // pred_check_branch
          %2062 = sbr.rel (%p2060) target = $region72
        $region71: #{tpu_custom_call.1} parent=59 // pred_region
          %s2064 = ssub.s32 128, 128
          %2065 = vsyncadd [#allocation4], %s2064
          %s2066 = smul.addr %s26, 128
          %s2067 = scalar_lea.hbm %s10, %s2066
          %s2069 = sshll.u32 [#allocation3], 4
          %s2070 = int_to_ptr.vmem [resolvable:$true] %s2069
          %2072 = dma.vmem_to_hbm [thread:$0]  %s2070, 128, %s2067, [#allocation4]
        $region72: #{tpu_custom_call.1} parent=59 // pred_fallthru
          _
        // Predicated region
        $region73: #{tpu_custom_call.1} parent=59 // pred_check
          %p2073 = pneg %p276
        $region74: #{tpu_custom_call.1} parent=59 // pred_check_branch
          %2075 = sbr.rel (%p2073) target = $region76
        $region75: #{tpu_custom_call.1} parent=59 // pred_region
          %2076 = dma.done [#allocation4], 128
        $region76: #{tpu_custom_call.1} parent=59 // pred_fallthru
          _
      $region60: #{tpu_custom_call.1} parent=5 // pred_fallthru
        _
      %p2077 = scmp.le.s32.totalorder 2, %s17
      // Predicated region
      $region77: #{tpu_custom_call.1} parent=5 // pred_check
        %p2078 = pneg %p2077
      $region78: #{tpu_custom_call.1} parent=5 // pred_check_branch
        %2080 = sbr.rel (%p2078) target = $region80
      $region79: #{tpu_custom_call.1} parent=5 // pred_region
        %s2081 = ssub.s32 %s17, 2
      $region80: #{tpu_custom_call.1} parent=5 // pred_fallthru
        _
    $region6: #{tpu_custom_call.1} parent=1 // loop_footer
      %s21 = sadd.s32 1, %s17
    $region7: #{tpu_custom_call.1} parent=1 // loop_footer_branch
      %16 = sbr.rel target = $region3
    $region8: #{tpu_custom_call.1} parent=1 // loop_exit
      _
    %2082 = vsyncpa [#allocation4], 1
    %s2083 = scalar_lea.sflag [#allocation4], 1
    %2084 = vsyncpa %s2083, 1

</llo_original>
